<compile_context>
chip_gen: v6e
topology: v6e:2x2x1
jax: 0.10.0
libtpu: 0.0.40
codegen_flags: <defaults>
</compile_context>

<pallas_src>
import jax
import jax.numpy as jnp
import numpy as np
from jax.experimental import pallas as pl
from jax.experimental.pallas import tpu as pltpu

# ---------------------------------------------------------------------------
# Small, TPU-friendly hyperparameters consistent with the module's forward.
# (torch defaults are input_size=10000, hidden=200, layers=3, classes=2 —
#  we keep layers/classes and shrink feature/hidden dims to vreg-aligned sizes)
# ---------------------------------------------------------------------------
INPUT_SIZE = 128
HIDDEN_SIZE = 128
NUM_LAYERS = 3
N_CLASSES = 2
C_PAD = 128          # lane-padded class dim (sliced to N_CLASSES in the wrapper)
BATCH = 16
SEQ = 8

WEIGHT_DTYPE = jnp.bfloat16   # MXU-native; f32 accumulation everywhere


def rnn_fc_kernel(x_ref, w_ih0_ref, w_ihr_ref, w_hh_ref, b_ref,
                  w_fc_ref, b_fc_ref, out_ref):
    """Multi-layer Elman RNN (tanh) + final Linear for one batch block.

    x_ref   : (T, BB, F)  bf16   time-major input block
    w_ih0   : (F, H)      bf16   layer-0 input weights (pre-transposed)
    w_ihr   : (L-1, H, H) bf16   layer>=1 input weights (pre-transposed)
    w_hh    : (L, H, H)   bf16   hidden weights (pre-transposed)
    b_ref   : (L, 1, H)   f32    combined bias (b_ih + b_hh) per layer
    w_fc    : (H, C_PAD)  bf16   fc weight (pre-transposed, zero-padded lanes)
    b_fc    : (1, C_PAD)  f32    fc bias (zero-padded lanes)
    out_ref : (BB, C_PAD) f32    logits (padded)
    """
    T = x_ref.shape[0]
    BB = x_ref.shape[1]
    F = x_ref.shape[2]

    # ---- layer 0: one big input-projection GEMM (off the critical path) ----
    x_flat = x_ref[...].reshape(T * BB, F)                       # rows: (t, b)
    proj0 = jnp.dot(x_flat, w_ih0_ref[...],
                    preferred_element_type=jnp.float32)          # (T*BB, H) f32

    w_hh0 = w_hh_ref[0]
    b0 = b_ref[0]                                                # (1, H) f32
    h = jnp.tanh(proj0[0:BB] + b0)                               # t = 0: h_prev == 0
    hs = [h]
    for t in range(1, T):                                        # static unroll
        pre = (proj0[t * BB:(t + 1) * BB]
               + jnp.dot(h.astype(WEIGHT_DTYPE), w_hh0,
                         preferred_element_type=jnp.float32)
               + b0)
        h = jnp.tanh(pre)
        hs.append(h)

    # ---- layers 1 .. L-1: per-timestep input projection (wavefront DAG) ----
    # h_l[t] depends only on h_{l-1}[t] and h_l[t-1]; critical path = T + L - 1.
    for l in range(1, NUM_LAYERS):
        w_ih_l = w_ihr_ref[l - 1]
        w_hh_l = w_hh_ref[l]
        b_l = b_ref[l]
        prev = hs
        h = jnp.tanh(jnp.dot(prev[0].astype(WEIGHT_DTYPE), w_ih_l,
                             preferred_element_type=jnp.float32) + b_l)
        hs = [h]
        last_layer = (l == NUM_LAYERS - 1)
        for t in range(1, T):
            pre = (jnp.dot(prev[t].astype(WEIGHT_DTYPE), w_ih_l,
                           preferred_element_type=jnp.float32)
                   + jnp.dot(h.astype(WEIGHT_DTYPE), w_hh_l,
                             preferred_element_type=jnp.float32)
                   + b_l)
            h = jnp.tanh(pre)
            if not last_layer:                # last layer only needs h_{T-1}
                hs.append(h)

    # ---- out[:, -1, :] is exactly `h`; dropout is identity in eval mode ----
    out_ref[...] = (jnp.dot(h.astype(WEIGHT_DTYPE), w_fc_ref[...],
                            preferred_element_type=jnp.float32)
                    + b_fc_ref[...])


def _num_batch_blocks(batch):
    """2 batch blocks (one per TensorCore) on v7x, otherwise a single block."""
    try:
        kind = (jax.devices()[0].device_kind or "").lower()
    except Exception:
        kind = ""
    if "v7" in kind and batch % 16 == 0:      # bb must stay a multiple of 8
        return 2
    return 1


def rnn_forward(x, params):
    """Wrapper reproducing MalwareDetectionRNN.forward (inference mode)."""
    w_ih0, w_ihr, w_hh, b, w_fc, b_fc = params

    # Same rank handling as the torch forward().
    if x.ndim == 1:
        x = x[None, None, :]
    elif x.ndim == 2:
        x = x[:, None, :]                      # mirrors x.unsqueeze(1)

    B, T, F = x.shape
    x_tm = jnp.transpose(x, (1, 0, 2)).astype(WEIGHT_DTYPE)   # (T, B, F), bf16

    n_blocks = _num_batch_blocks(B)
    bb = B // n_blocks
    grid = (n_blocks,)
    if n_blocks > 1:
        dim_sems = (pltpu.CORE_PARALLEL,)      # one recurrence chain per TC (v7x)
    else:
        dim_sems = ("arbitrary",)              # single TC: one chain, no grid split

    def full_spec(a):
        # whole-array block, constant block index -> fetched once, reused
        nd = a.ndim
        return pl.BlockSpec(a.shape, lambda i, _nd=nd: (0,) * _nd)

    out_padded = pl.pallas_call(
        rnn_fc_kernel,
        out_shape=jax.ShapeDtypeStruct((B, C_PAD), jnp.float32),
        grid=grid,
        in_specs=[
            pl.BlockSpec((T, bb, F), lambda i: (0, i, 0)),   # batch-blocked input
            full_spec(w_ih0),
            full_spec(w_ihr),
            full_spec(w_hh),
            full_spec(b),
            full_spec(w_fc),
            full_spec(b_fc),
        ],
        out_specs=pl.BlockSpec((bb, C_PAD), lambda i: (i, 0)),
        compiler_params=pltpu.CompilerParams(dimension_semantics=dim_sems),
    )(x_tm, w_ih0, w_ihr, w_hh, b, w_fc, b_fc)
    return out_padded[:, :N_CLASSES]


def init_params(key):
    """Deterministic init mirroring torch's U(-1/sqrt(H), 1/sqrt(H)) scheme."""
    ks = jax.random.split(key, 6)
    k_rnn = 1.0 / np.sqrt(HIDDEN_SIZE)
    k_fc = 1.0 / np.sqrt(HIDDEN_SIZE)
    # layer-0 input weights, pre-transposed to (F, H)
    w_ih0 = jax.random.uniform(ks[0], (INPUT_SIZE, HIDDEN_SIZE),
                               jnp.float32, -k_rnn, k_rnn).astype(WEIGHT_DTYPE)
    # layers >=1 input weights (H, H), pre-transposed
    w_ihr = jax.random.uniform(ks[1], (NUM_LAYERS - 1, HIDDEN_SIZE, HIDDEN_SIZE),
                               jnp.float32, -k_rnn, k_rnn).astype(WEIGHT_DTYPE)
    # hidden weights, pre-transposed
    w_hh = jax.random.uniform(ks[2], (NUM_LAYERS, HIDDEN_SIZE, HIDDEN_SIZE),
                              jnp.float32, -k_rnn, k_rnn).astype(WEIGHT_DTYPE)
    # combined bias b_ih + b_hh per layer  -> (L, 1, H), kept in f32
    b_ih = jax.random.uniform(ks[3], (NUM_LAYERS, HIDDEN_SIZE),
                              jnp.float32, -k_rnn, k_rnn)
    b_hh = jax.random.uniform(ks[4], (NUM_LAYERS, HIDDEN_SIZE),
                              jnp.float32, -k_rnn, k_rnn)
    b = (b_ih + b_hh)[:, None, :]
    # fc: (H, C) pre-transposed, zero-padded to C_PAD lanes
    w_fc_small = jax.random.uniform(ks[5], (HIDDEN_SIZE, N_CLASSES),
                                    jnp.float32, -k_fc, k_fc)
    w_fc = (jnp.zeros((HIDDEN_SIZE, C_PAD), jnp.float32)
            .at[:, :N_CLASSES].set(w_fc_small)).astype(WEIGHT_DTYPE)
    b_fc = jnp.zeros((1, C_PAD), jnp.float32)   # torch bias init left at zero pad
    return (w_ih0, w_ihr, w_hh, b, w_fc, b_fc)


def rnn_forward_ref(x, params):
    """Pure-JAX reference (mirrors torch nn.RNN + fc, same bf16/f32 precision)."""
    w_ih0, w_ihr, w_hh, b, w_fc, b_fc = params
    if x.ndim == 1:
        x = x[None, None, :]
    elif x.ndim == 2:
        x = x[:, None, :]
    B, T, _ = x.shape
    inp = x.astype(WEIGHT_DTYPE)
    h = None
    for l in range(NUM_LAYERS):
        w_ih = w_ih0 if l == 0 else w_ihr[l - 1]
        h = jnp.zeros((B, HIDDEN_SIZE), jnp.float32)
        outs = []
        for t in range(T):
            pre = (jnp.dot(inp[:, t, :], w_ih, preferred_element_type=jnp.float32)
                   + jnp.dot(h.astype(WEIGHT_DTYPE), w_hh[l],
                             preferred_element_type=jnp.float32)
                   + b[l, 0])
            h = jnp.tanh(pre)
            outs.append(h)
        inp = jnp.stack(outs, axis=1).astype(WEIGHT_DTYPE)
    logits = (jnp.dot(h.astype(WEIGHT_DTYPE), w_fc,
                      preferred_element_type=jnp.float32) + b_fc)
    return logits[:, :N_CLASSES]


if __name__ == "__main__":
    key = jax.random.PRNGKey(0)
    k_x, k_p = jax.random.split(key)
    x = jax.random.uniform(k_x, (BATCH, SEQ, INPUT_SIZE), jnp.float32)
    params = init_params(k_p)

    logits = jax.jit(rnn_forward)(x, params)
    logits = jax.block_until_ready(logits)

    ref = rnn_forward_ref(x, params)
    assert logits.shape == (BATCH, N_CLASSES)
    np.testing.assert_allclose(np.asarray(logits, dtype=np.float32),
                               np.asarray(ref, dtype=np.float32),
                               rtol=2e-3, atol=2e-3)
    print("KERNEL_OK")
</pallas_src>

<mosaic_0001>
module attributes {stable_mosaic.version = 11 : i64} {
  func.func @rnn_fc_kernel(%arg0: i32, %arg1: memref<8x16x128xbf16, #tpu.memory_space<vmem>>, %arg2: memref<128x128xbf16, #tpu.memory_space<vmem>>, %arg3: memref<2x128x128xbf16, #tpu.memory_space<vmem>>, %arg4: memref<3x128x128xbf16, #tpu.memory_space<vmem>>, %arg5: memref<3x1x128xf32, #tpu.memory_space<vmem>>, %arg6: memref<128x128xbf16, #tpu.memory_space<vmem>>, %arg7: memref<1x128xf32, #tpu.memory_space<vmem>>, %arg8: memref<16x128xf32, #tpu.memory_space<vmem>>) attributes {dimension_semantics = [#tpu.dimension_semantics<arbitrary>], iteration_bounds = array<i64: 1>, scalar_prefetch = 0 : i64, scratch_operands = 0 : i64, tpu.core_type = #tpu.core_type<tc>, window_params = [{transform_indices = @transform_0, window_bounds = array<i64: 8, 16, 128>}, {pipeline_mode = #tpu.pipeline_mode<synchronous>, transform_indices = @transform_1, window_bounds = array<i64: 128, 128>}, {pipeline_mode = #tpu.pipeline_mode<synchronous>, transform_indices = @transform_2, window_bounds = array<i64: 2, 128, 128>}, {pipeline_mode = #tpu.pipeline_mode<synchronous>, transform_indices = @transform_3, window_bounds = array<i64: 3, 128, 128>}, {pipeline_mode = #tpu.pipeline_mode<synchronous>, transform_indices = @transform_4, window_bounds = array<i64: 3, 1, 128>}, {pipeline_mode = #tpu.pipeline_mode<synchronous>, transform_indices = @transform_5, window_bounds = array<i64: 128, 128>}, {pipeline_mode = #tpu.pipeline_mode<synchronous>, transform_indices = @transform_6, window_bounds = array<i64: 1, 128>}, {transform_indices = @transform_7, window_bounds = array<i64: 16, 128>}]} {
    %c0 = arith.constant 0 : index
    %c0_0 = arith.constant 0 : index
    %c0_1 = arith.constant 0 : index
    %0 = vector.load %arg1[%c0, %c0_0, %c0_1] : memref<8x16x128xbf16, #tpu.memory_space<vmem>>, vector<8x16x128xbf16>
    %1 = vector.shape_cast %0 : vector<8x16x128xbf16> to vector<128x128xbf16>
    %c0_2 = arith.constant 0 : index
    %c0_3 = arith.constant 0 : index
    %2 = vector.load %arg2[%c0_2, %c0_3] : memref<128x128xbf16, #tpu.memory_space<vmem>>, vector<128x128xbf16>
    %cst = arith.constant dense<0.000000e+00> : vector<128x128xf32>
    %3 = tpu.matmul %1, %2, %cst {dimension_numbers = #tpu.dot_dimension_numbers<[1], [0], [0], [1], [0, 0, 1, 1], [], []>} : vector<128x128xbf16>, vector<128x128xbf16>, vector<128x128xf32> -> vector<128x128xf32>
    %c0_4 = arith.constant 0 : index
    %c0_5 = arith.constant 0 : index
    %c0_6 = arith.constant 0 : index
    %4 = vector.load %arg4[%c0_4, %c0_5, %c0_6] : memref<3x128x128xbf16, #tpu.memory_space<vmem>>, vector<1x128x128xbf16>
    %5 = vector.shape_cast %4 : vector<1x128x128xbf16> to vector<128x128xbf16>
    %c0_7 = arith.constant 0 : index
    %c0_8 = arith.constant 0 : index
    %c0_9 = arith.constant 0 : index
    %6 = vector.load %arg5[%c0_7, %c0_8, %c0_9] : memref<3x1x128xf32, #tpu.memory_space<vmem>>, vector<1x1x128xf32>
    %7 = vector.shape_cast %6 : vector<1x1x128xf32> to vector<1x128xf32>
    %8 = vector.extract_strided_slice %3 {offsets = [0, 0], sizes = [16, 128], strides = [1, 1]} : vector<128x128xf32> to vector<16x128xf32>
    %9 = vector.broadcast %7 : vector<1x128xf32> to vector<16x128xf32>
    %10 = arith.addf %8, %9 : vector<16x128xf32>
    %11 = math.tanh %10 : vector<16x128xf32>
    %12 = vector.extract_strided_slice %3 {offsets = [16, 0], sizes = [16, 128], strides = [1, 1]} : vector<128x128xf32> to vector<16x128xf32>
    %13 = arith.truncf %11 : vector<16x128xf32> to vector<16x128xbf16>
    %cst_10 = arith.constant dense<0.000000e+00> : vector<16x128xf32>
    %14 = tpu.matmul %13, %5, %cst_10 {dimension_numbers = #tpu.dot_dimension_numbers<[1], [0], [0], [1], [0, 0, 1, 1], [], []>} : vector<16x128xbf16>, vector<128x128xbf16>, vector<16x128xf32> -> vector<16x128xf32>
    %15 = arith.addf %12, %14 : vector<16x128xf32>
    %16 = vector.broadcast %7 : vector<1x128xf32> to vector<16x128xf32>
    %17 = arith.addf %15, %16 : vector<16x128xf32>
    %18 = math.tanh %17 : vector<16x128xf32>
    %19 = vector.extract_strided_slice %3 {offsets = [32, 0], sizes = [16, 128], strides = [1, 1]} : vector<128x128xf32> to vector<16x128xf32>
    %20 = arith.truncf %18 : vector<16x128xf32> to vector<16x128xbf16>
    %cst_11 = arith.constant dense<0.000000e+00> : vector<16x128xf32>
    %21 = tpu.matmul %20, %5, %cst_11 {dimension_numbers = #tpu.dot_dimension_numbers<[1], [0], [0], [1], [0, 0, 1, 1], [], []>} : vector<16x128xbf16>, vector<128x128xbf16>, vector<16x128xf32> -> vector<16x128xf32>
    %22 = arith.addf %19, %21 : vector<16x128xf32>
    %23 = vector.broadcast %7 : vector<1x128xf32> to vector<16x128xf32>
    %24 = arith.addf %22, %23 : vector<16x128xf32>
    %25 = math.tanh %24 : vector<16x128xf32>
    %26 = vector.extract_strided_slice %3 {offsets = [48, 0], sizes = [16, 128], strides = [1, 1]} : vector<128x128xf32> to vector<16x128xf32>
    %27 = arith.truncf %25 : vector<16x128xf32> to vector<16x128xbf16>
    %cst_12 = arith.constant dense<0.000000e+00> : vector<16x128xf32>
    %28 = tpu.matmul %27, %5, %cst_12 {dimension_numbers = #tpu.dot_dimension_numbers<[1], [0], [0], [1], [0, 0, 1, 1], [], []>} : vector<16x128xbf16>, vector<128x128xbf16>, vector<16x128xf32> -> vector<16x128xf32>
    %29 = arith.addf %26, %28 : vector<16x128xf32>
    %30 = vector.broadcast %7 : vector<1x128xf32> to vector<16x128xf32>
    %31 = arith.addf %29, %30 : vector<16x128xf32>
    %32 = math.tanh %31 : vector<16x128xf32>
    %33 = vector.extract_strided_slice %3 {offsets = [64, 0], sizes = [16, 128], strides = [1, 1]} : vector<128x128xf32> to vector<16x128xf32>
    %34 = arith.truncf %32 : vector<16x128xf32> to vector<16x128xbf16>
    %cst_13 = arith.constant dense<0.000000e+00> : vector<16x128xf32>
    %35 = tpu.matmul %34, %5, %cst_13 {dimension_numbers = #tpu.dot_dimension_numbers<[1], [0], [0], [1], [0, 0, 1, 1], [], []>} : vector<16x128xbf16>, vector<128x128xbf16>, vector<16x128xf32> -> vector<16x128xf32>
    %36 = arith.addf %33, %35 : vector<16x128xf32>
    %37 = vector.broadcast %7 : vector<1x128xf32> to vector<16x128xf32>
    %38 = arith.addf %36, %37 : vector<16x128xf32>
    %39 = math.tanh %38 : vector<16x128xf32>
    %40 = vector.extract_strided_slice %3 {offsets = [80, 0], sizes = [16, 128], strides = [1, 1]} : vector<128x128xf32> to vector<16x128xf32>
    %41 = arith.truncf %39 : vector<16x128xf32> to vector<16x128xbf16>
    %cst_14 = arith.constant dense<0.000000e+00> : vector<16x128xf32>
    %42 = tpu.matmul %41, %5, %cst_14 {dimension_numbers = #tpu.dot_dimension_numbers<[1], [0], [0], [1], [0, 0, 1, 1], [], []>} : vector<16x128xbf16>, vector<128x128xbf16>, vector<16x128xf32> -> vector<16x128xf32>
    %43 = arith.addf %40, %42 : vector<16x128xf32>
    %44 = vector.broadcast %7 : vector<1x128xf32> to vector<16x128xf32>
    %45 = arith.addf %43, %44 : vector<16x128xf32>
    %46 = math.tanh %45 : vector<16x128xf32>
    %47 = vector.extract_strided_slice %3 {offsets = [96, 0], sizes = [16, 128], strides = [1, 1]} : vector<128x128xf32> to vector<16x128xf32>
    %48 = arith.truncf %46 : vector<16x128xf32> to vector<16x128xbf16>
    %cst_15 = arith.constant dense<0.000000e+00> : vector<16x128xf32>
    %49 = tpu.matmul %48, %5, %cst_15 {dimension_numbers = #tpu.dot_dimension_numbers<[1], [0], [0], [1], [0, 0, 1, 1], [], []>} : vector<16x128xbf16>, vector<128x128xbf16>, vector<16x128xf32> -> vector<16x128xf32>
    %50 = arith.addf %47, %49 : vector<16x128xf32>
    %51 = vector.broadcast %7 : vector<1x128xf32> to vector<16x128xf32>
    %52 = arith.addf %50, %51 : vector<16x128xf32>
    %53 = math.tanh %52 : vector<16x128xf32>
    %54 = vector.extract_strided_slice %3 {offsets = [112, 0], sizes = [16, 128], strides = [1, 1]} : vector<128x128xf32> to vector<16x128xf32>
    %55 = arith.truncf %53 : vector<16x128xf32> to vector<16x128xbf16>
    %cst_16 = arith.constant dense<0.000000e+00> : vector<16x128xf32>
    %56 = tpu.matmul %55, %5, %cst_16 {dimension_numbers = #tpu.dot_dimension_numbers<[1], [0], [0], [1], [0, 0, 1, 1], [], []>} : vector<16x128xbf16>, vector<128x128xbf16>, vector<16x128xf32> -> vector<16x128xf32>
    %57 = arith.addf %54, %56 : vector<16x128xf32>
    %58 = vector.broadcast %7 : vector<1x128xf32> to vector<16x128xf32>
    %59 = arith.addf %57, %58 : vector<16x128xf32>
    %60 = math.tanh %59 : vector<16x128xf32>
    %c0_17 = arith.constant 0 : index
    %c0_18 = arith.constant 0 : index
    %c0_19 = arith.constant 0 : index
    %61 = vector.load %arg3[%c0_17, %c0_18, %c0_19] : memref<2x128x128xbf16, #tpu.memory_space<vmem>>, vector<1x128x128xbf16>
    %62 = vector.shape_cast %61 : vector<1x128x128xbf16> to vector<128x128xbf16>
    %c1 = arith.constant 1 : index
    %c0_20 = arith.constant 0 : index
    %c0_21 = arith.constant 0 : index
    %63 = vector.load %arg4[%c1, %c0_20, %c0_21] : memref<3x128x128xbf16, #tpu.memory_space<vmem>>, vector<1x128x128xbf16>
    %64 = vector.shape_cast %63 : vector<1x128x128xbf16> to vector<128x128xbf16>
    %c1_22 = arith.constant 1 : index
    %c0_23 = arith.constant 0 : index
    %c0_24 = arith.constant 0 : index
    %65 = vector.load %arg5[%c1_22, %c0_23, %c0_24] : memref<3x1x128xf32, #tpu.memory_space<vmem>>, vector<1x1x128xf32>
    %66 = vector.shape_cast %65 : vector<1x1x128xf32> to vector<1x128xf32>
    %67 = arith.truncf %11 : vector<16x128xf32> to vector<16x128xbf16>
    %cst_25 = arith.constant dense<0.000000e+00> : vector<16x128xf32>
    %68 = tpu.matmul %67, %62, %cst_25 {dimension_numbers = #tpu.dot_dimension_numbers<[1], [0], [0], [1], [0, 0, 1, 1], [], []>} : vector<16x128xbf16>, vector<128x128xbf16>, vector<16x128xf32> -> vector<16x128xf32>
    %69 = vector.broadcast %66 : vector<1x128xf32> to vector<16x128xf32>
    %70 = arith.addf %68, %69 : vector<16x128xf32>
    %71 = math.tanh %70 : vector<16x128xf32>
    %72 = arith.truncf %18 : vector<16x128xf32> to vector<16x128xbf16>
    %cst_26 = arith.constant dense<0.000000e+00> : vector<16x128xf32>
    %73 = tpu.matmul %72, %62, %cst_26 {dimension_numbers = #tpu.dot_dimension_numbers<[1], [0], [0], [1], [0, 0, 1, 1], [], []>} : vector<16x128xbf16>, vector<128x128xbf16>, vector<16x128xf32> -> vector<16x128xf32>
    %74 = arith.truncf %71 : vector<16x128xf32> to vector<16x128xbf16>
    %cst_27 = arith.constant dense<0.000000e+00> : vector<16x128xf32>
    %75 = tpu.matmul %74, %64, %cst_27 {dimension_numbers = #tpu.dot_dimension_numbers<[1], [0], [0], [1], [0, 0, 1, 1], [], []>} : vector<16x128xbf16>, vector<128x128xbf16>, vector<16x128xf32> -> vector<16x128xf32>
    %76 = arith.addf %73, %75 : vector<16x128xf32>
    %77 = vector.broadcast %66 : vector<1x128xf32> to vector<16x128xf32>
    %78 = arith.addf %76, %77 : vector<16x128xf32>
    %79 = math.tanh %78 : vector<16x128xf32>
    %80 = arith.truncf %25 : vector<16x128xf32> to vector<16x128xbf16>
    %cst_28 = arith.constant dense<0.000000e+00> : vector<16x128xf32>
    %81 = tpu.matmul %80, %62, %cst_28 {dimension_numbers = #tpu.dot_dimension_numbers<[1], [0], [0], [1], [0, 0, 1, 1], [], []>} : vector<16x128xbf16>, vector<128x128xbf16>, vector<16x128xf32> -> vector<16x128xf32>
    %82 = arith.truncf %79 : vector<16x128xf32> to vector<16x128xbf16>
    %cst_29 = arith.constant dense<0.000000e+00> : vector<16x128xf32>
    %83 = tpu.matmul %82, %64, %cst_29 {dimension_numbers = #tpu.dot_dimension_numbers<[1], [0], [0], [1], [0, 0, 1, 1], [], []>} : vector<16x128xbf16>, vector<128x128xbf16>, vector<16x128xf32> -> vector<16x128xf32>
    %84 = arith.addf %81, %83 : vector<16x128xf32>
    %85 = vector.broadcast %66 : vector<1x128xf32> to vector<16x128xf32>
    %86 = arith.addf %84, %85 : vector<16x128xf32>
    %87 = math.tanh %86 : vector<16x128xf32>
    %88 = arith.truncf %32 : vector<16x128xf32> to vector<16x128xbf16>
    %cst_30 = arith.constant dense<0.000000e+00> : vector<16x128xf32>
    %89 = tpu.matmul %88, %62, %cst_30 {dimension_numbers = #tpu.dot_dimension_numbers<[1], [0], [0], [1], [0, 0, 1, 1], [], []>} : vector<16x128xbf16>, vector<128x128xbf16>, vector<16x128xf32> -> vector<16x128xf32>
    %90 = arith.truncf %87 : vector<16x128xf32> to vector<16x128xbf16>
    %cst_31 = arith.constant dense<0.000000e+00> : vector<16x128xf32>
    %91 = tpu.matmul %90, %64, %cst_31 {dimension_numbers = #tpu.dot_dimension_numbers<[1], [0], [0], [1], [0, 0, 1, 1], [], []>} : vector<16x128xbf16>, vector<128x128xbf16>, vector<16x128xf32> -> vector<16x128xf32>
    %92 = arith.addf %89, %91 : vector<16x128xf32>
    %93 = vector.broadcast %66 : vector<1x128xf32> to vector<16x128xf32>
    %94 = arith.addf %92, %93 : vector<16x128xf32>
    %95 = math.tanh %94 : vector<16x128xf32>
    %96 = arith.truncf %39 : vector<16x128xf32> to vector<16x128xbf16>
    %cst_32 = arith.constant dense<0.000000e+00> : vector<16x128xf32>
    %97 = tpu.matmul %96, %62, %cst_32 {dimension_numbers = #tpu.dot_dimension_numbers<[1], [0], [0], [1], [0, 0, 1, 1], [], []>} : vector<16x128xbf16>, vector<128x128xbf16>, vector<16x128xf32> -> vector<16x128xf32>
    %98 = arith.truncf %95 : vector<16x128xf32> to vector<16x128xbf16>
    %cst_33 = arith.constant dense<0.000000e+00> : vector<16x128xf32>
    %99 = tpu.matmul %98, %64, %cst_33 {dimension_numbers = #tpu.dot_dimension_numbers<[1], [0], [0], [1], [0, 0, 1, 1], [], []>} : vector<16x128xbf16>, vector<128x128xbf16>, vector<16x128xf32> -> vector<16x128xf32>
    %100 = arith.addf %97, %99 : vector<16x128xf32>
    %101 = vector.broadcast %66 : vector<1x128xf32> to vector<16x128xf32>
    %102 = arith.addf %100, %101 : vector<16x128xf32>
    %103 = math.tanh %102 : vector<16x128xf32>
    %104 = arith.truncf %46 : vector<16x128xf32> to vector<16x128xbf16>
    %cst_34 = arith.constant dense<0.000000e+00> : vector<16x128xf32>
    %105 = tpu.matmul %104, %62, %cst_34 {dimension_numbers = #tpu.dot_dimension_numbers<[1], [0], [0], [1], [0, 0, 1, 1], [], []>} : vector<16x128xbf16>, vector<128x128xbf16>, vector<16x128xf32> -> vector<16x128xf32>
    %106 = arith.truncf %103 : vector<16x128xf32> to vector<16x128xbf16>
    %cst_35 = arith.constant dense<0.000000e+00> : vector<16x128xf32>
    %107 = tpu.matmul %106, %64, %cst_35 {dimension_numbers = #tpu.dot_dimension_numbers<[1], [0], [0], [1], [0, 0, 1, 1], [], []>} : vector<16x128xbf16>, vector<128x128xbf16>, vector<16x128xf32> -> vector<16x128xf32>
    %108 = arith.addf %105, %107 : vector<16x128xf32>
    %109 = vector.broadcast %66 : vector<1x128xf32> to vector<16x128xf32>
    %110 = arith.addf %108, %109 : vector<16x128xf32>
    %111 = math.tanh %110 : vector<16x128xf32>
    %112 = arith.truncf %53 : vector<16x128xf32> to vector<16x128xbf16>
    %cst_36 = arith.constant dense<0.000000e+00> : vector<16x128xf32>
    %113 = tpu.matmul %112, %62, %cst_36 {dimension_numbers = #tpu.dot_dimension_numbers<[1], [0], [0], [1], [0, 0, 1, 1], [], []>} : vector<16x128xbf16>, vector<128x128xbf16>, vector<16x128xf32> -> vector<16x128xf32>
    %114 = arith.truncf %111 : vector<16x128xf32> to vector<16x128xbf16>
    %cst_37 = arith.constant dense<0.000000e+00> : vector<16x128xf32>
    %115 = tpu.matmul %114, %64, %cst_37 {dimension_numbers = #tpu.dot_dimension_numbers<[1], [0], [0], [1], [0, 0, 1, 1], [], []>} : vector<16x128xbf16>, vector<128x128xbf16>, vector<16x128xf32> -> vector<16x128xf32>
    %116 = arith.addf %113, %115 : vector<16x128xf32>
    %117 = vector.broadcast %66 : vector<1x128xf32> to vector<16x128xf32>
    %118 = arith.addf %116, %117 : vector<16x128xf32>
    %119 = math.tanh %118 : vector<16x128xf32>
    %120 = arith.truncf %60 : vector<16x128xf32> to vector<16x128xbf16>
    %cst_38 = arith.constant dense<0.000000e+00> : vector<16x128xf32>
    %121 = tpu.matmul %120, %62, %cst_38 {dimension_numbers = #tpu.dot_dimension_numbers<[1], [0], [0], [1], [0, 0, 1, 1], [], []>} : vector<16x128xbf16>, vector<128x128xbf16>, vector<16x128xf32> -> vector<16x128xf32>
    %122 = arith.truncf %119 : vector<16x128xf32> to vector<16x128xbf16>
    %cst_39 = arith.constant dense<0.000000e+00> : vector<16x128xf32>
    %123 = tpu.matmul %122, %64, %cst_39 {dimension_numbers = #tpu.dot_dimension_numbers<[1], [0], [0], [1], [0, 0, 1, 1], [], []>} : vector<16x128xbf16>, vector<128x128xbf16>, vector<16x128xf32> -> vector<16x128xf32>
    %124 = arith.addf %121, %123 : vector<16x128xf32>
    %125 = vector.broadcast %66 : vector<1x128xf32> to vector<16x128xf32>
    %126 = arith.addf %124, %125 : vector<16x128xf32>
    %127 = math.tanh %126 : vector<16x128xf32>
    %c1_40 = arith.constant 1 : index
    %c0_41 = arith.constant 0 : index
    %c0_42 = arith.constant 0 : index
    %128 = vector.load %arg3[%c1_40, %c0_41, %c0_42] : memref<2x128x128xbf16, #tpu.memory_space<vmem>>, vector<1x128x128xbf16>
    %129 = vector.shape_cast %128 : vector<1x128x128xbf16> to vector<128x128xbf16>
    %c2 = arith.constant 2 : index
    %c0_43 = arith.constant 0 : index
    %c0_44 = arith.constant 0 : index
    %130 = vector.load %arg4[%c2, %c0_43, %c0_44] : memref<3x128x128xbf16, #tpu.memory_space<vmem>>, vector<1x128x128xbf16>
    %131 = vector.shape_cast %130 : vector<1x128x128xbf16> to vector<128x128xbf16>
    %c2_45 = arith.constant 2 : index
    %c0_46 = arith.constant 0 : index
    %c0_47 = arith.constant 0 : index
    %132 = vector.load %arg5[%c2_45, %c0_46, %c0_47] : memref<3x1x128xf32, #tpu.memory_space<vmem>>, vector<1x1x128xf32>
    %133 = vector.shape_cast %132 : vector<1x1x128xf32> to vector<1x128xf32>
    %134 = arith.truncf %71 : vector<16x128xf32> to vector<16x128xbf16>
    %cst_48 = arith.constant dense<0.000000e+00> : vector<16x128xf32>
    %135 = tpu.matmul %134, %129, %cst_48 {dimension_numbers = #tpu.dot_dimension_numbers<[1], [0], [0], [1], [0, 0, 1, 1], [], []>} : vector<16x128xbf16>, vector<128x128xbf16>, vector<16x128xf32> -> vector<16x128xf32>
    %136 = vector.broadcast %133 : vector<1x128xf32> to vector<16x128xf32>
    %137 = arith.addf %135, %136 : vector<16x128xf32>
    %138 = math.tanh %137 : vector<16x128xf32>
    %139 = arith.truncf %79 : vector<16x128xf32> to vector<16x128xbf16>
    %cst_49 = arith.constant dense<0.000000e+00> : vector<16x128xf32>
    %140 = tpu.matmul %139, %129, %cst_49 {dimension_numbers = #tpu.dot_dimension_numbers<[1], [0], [0], [1], [0, 0, 1, 1], [], []>} : vector<16x128xbf16>, vector<128x128xbf16>, vector<16x128xf32> -> vector<16x128xf32>
    %141 = arith.truncf %138 : vector<16x128xf32> to vector<16x128xbf16>
    %cst_50 = arith.constant dense<0.000000e+00> : vector<16x128xf32>
    %142 = tpu.matmul %141, %131, %cst_50 {dimension_numbers = #tpu.dot_dimension_numbers<[1], [0], [0], [1], [0, 0, 1, 1], [], []>} : vector<16x128xbf16>, vector<128x128xbf16>, vector<16x128xf32> -> vector<16x128xf32>
    %143 = arith.addf %140, %142 : vector<16x128xf32>
    %144 = vector.broadcast %133 : vector<1x128xf32> to vector<16x128xf32>
    %145 = arith.addf %143, %144 : vector<16x128xf32>
    %146 = math.tanh %145 : vector<16x128xf32>
    %147 = arith.truncf %87 : vector<16x128xf32> to vector<16x128xbf16>
    %cst_51 = arith.constant dense<0.000000e+00> : vector<16x128xf32>
    %148 = tpu.matmul %147, %129, %cst_51 {dimension_numbers = #tpu.dot_dimension_numbers<[1], [0], [0], [1], [0, 0, 1, 1], [], []>} : vector<16x128xbf16>, vector<128x128xbf16>, vector<16x128xf32> -> vector<16x128xf32>
    %149 = arith.truncf %146 : vector<16x128xf32> to vector<16x128xbf16>
    %cst_52 = arith.constant dense<0.000000e+00> : vector<16x128xf32>
    %150 = tpu.matmul %149, %131, %cst_52 {dimension_numbers = #tpu.dot_dimension_numbers<[1], [0], [0], [1], [0, 0, 1, 1], [], []>} : vector<16x128xbf16>, vector<128x128xbf16>, vector<16x128xf32> -> vector<16x128xf32>
    %151 = arith.addf %148, %150 : vector<16x128xf32>
    %152 = vector.broadcast %133 : vector<1x128xf32> to vector<16x128xf32>
    %153 = arith.addf %151, %152 : vector<16x128xf32>
    %154 = math.tanh %153 : vector<16x128xf32>
    %155 = arith.truncf %95 : vector<16x128xf32> to vector<16x128xbf16>
    %cst_53 = arith.constant dense<0.000000e+00> : vector<16x128xf32>
    %156 = tpu.matmul %155, %129, %cst_53 {dimension_numbers = #tpu.dot_dimension_numbers<[1], [0], [0], [1], [0, 0, 1, 1], [], []>} : vector<16x128xbf16>, vector<128x128xbf16>, vector<16x128xf32> -> vector<16x128xf32>
    %157 = arith.truncf %154 : vector<16x128xf32> to vector<16x128xbf16>
    %cst_54 = arith.constant dense<0.000000e+00> : vector<16x128xf32>
    %158 = tpu.matmul %157, %131, %cst_54 {dimension_numbers = #tpu.dot_dimension_numbers<[1], [0], [0], [1], [0, 0, 1, 1], [], []>} : vector<16x128xbf16>, vector<128x128xbf16>, vector<16x128xf32> -> vector<16x128xf32>
    %159 = arith.addf %156, %158 : vector<16x128xf32>
    %160 = vector.broadcast %133 : vector<1x128xf32> to vector<16x128xf32>
    %161 = arith.addf %159, %160 : vector<16x128xf32>
    %162 = math.tanh %161 : vector<16x128xf32>
    %163 = arith.truncf %103 : vector<16x128xf32> to vector<16x128xbf16>
    %cst_55 = arith.constant dense<0.000000e+00> : vector<16x128xf32>
    %164 = tpu.matmul %163, %129, %cst_55 {dimension_numbers = #tpu.dot_dimension_numbers<[1], [0], [0], [1], [0, 0, 1, 1], [], []>} : vector<16x128xbf16>, vector<128x128xbf16>, vector<16x128xf32> -> vector<16x128xf32>
    %165 = arith.truncf %162 : vector<16x128xf32> to vector<16x128xbf16>
    %cst_56 = arith.constant dense<0.000000e+00> : vector<16x128xf32>
    %166 = tpu.matmul %165, %131, %cst_56 {dimension_numbers = #tpu.dot_dimension_numbers<[1], [0], [0], [1], [0, 0, 1, 1], [], []>} : vector<16x128xbf16>, vector<128x128xbf16>, vector<16x128xf32> -> vector<16x128xf32>
    %167 = arith.addf %164, %166 : vector<16x128xf32>
    %168 = vector.broadcast %133 : vector<1x128xf32> to vector<16x128xf32>
    %169 = arith.addf %167, %168 : vector<16x128xf32>
    %170 = math.tanh %169 : vector<16x128xf32>
    %171 = arith.truncf %111 : vector<16x128xf32> to vector<16x128xbf16>
    %cst_57 = arith.constant dense<0.000000e+00> : vector<16x128xf32>
    %172 = tpu.matmul %171, %129, %cst_57 {dimension_numbers = #tpu.dot_dimension_numbers<[1], [0], [0], [1], [0, 0, 1, 1], [], []>} : vector<16x128xbf16>, vector<128x128xbf16>, vector<16x128xf32> -> vector<16x128xf32>
    %173 = arith.truncf %170 : vector<16x128xf32> to vector<16x128xbf16>
    %cst_58 = arith.constant dense<0.000000e+00> : vector<16x128xf32>
    %174 = tpu.matmul %173, %131, %cst_58 {dimension_numbers = #tpu.dot_dimension_numbers<[1], [0], [0], [1], [0, 0, 1, 1], [], []>} : vector<16x128xbf16>, vector<128x128xbf16>, vector<16x128xf32> -> vector<16x128xf32>
    %175 = arith.addf %172, %174 : vector<16x128xf32>
    %176 = vector.broadcast %133 : vector<1x128xf32> to vector<16x128xf32>
    %177 = arith.addf %175, %176 : vector<16x128xf32>
    %178 = math.tanh %177 : vector<16x128xf32>
    %179 = arith.truncf %119 : vector<16x128xf32> to vector<16x128xbf16>
    %cst_59 = arith.constant dense<0.000000e+00> : vector<16x128xf32>
    %180 = tpu.matmul %179, %129, %cst_59 {dimension_numbers = #tpu.dot_dimension_numbers<[1], [0], [0], [1], [0, 0, 1, 1], [], []>} : vector<16x128xbf16>, vector<128x128xbf16>, vector<16x128xf32> -> vector<16x128xf32>
    %181 = arith.truncf %178 : vector<16x128xf32> to vector<16x128xbf16>
    %cst_60 = arith.constant dense<0.000000e+00> : vector<16x128xf32>
    %182 = tpu.matmul %181, %131, %cst_60 {dimension_numbers = #tpu.dot_dimension_numbers<[1], [0], [0], [1], [0, 0, 1, 1], [], []>} : vector<16x128xbf16>, vector<128x128xbf16>, vector<16x128xf32> -> vector<16x128xf32>
    %183 = arith.addf %180, %182 : vector<16x128xf32>
    %184 = vector.broadcast %133 : vector<1x128xf32> to vector<16x128xf32>
    %185 = arith.addf %183, %184 : vector<16x128xf32>
    %186 = math.tanh %185 : vector<16x128xf32>
    %187 = arith.truncf %127 : vector<16x128xf32> to vector<16x128xbf16>
    %cst_61 = arith.constant dense<0.000000e+00> : vector<16x128xf32>
    %188 = tpu.matmul %187, %129, %cst_61 {dimension_numbers = #tpu.dot_dimension_numbers<[1], [0], [0], [1], [0, 0, 1, 1], [], []>} : vector<16x128xbf16>, vector<128x128xbf16>, vector<16x128xf32> -> vector<16x128xf32>
    %189 = arith.truncf %186 : vector<16x128xf32> to vector<16x128xbf16>
    %cst_62 = arith.constant dense<0.000000e+00> : vector<16x128xf32>
    %190 = tpu.matmul %189, %131, %cst_62 {dimension_numbers = #tpu.dot_dimension_numbers<[1], [0], [0], [1], [0, 0, 1, 1], [], []>} : vector<16x128xbf16>, vector<128x128xbf16>, vector<16x128xf32> -> vector<16x128xf32>
    %191 = arith.addf %188, %190 : vector<16x128xf32>
    %192 = vector.broadcast %133 : vector<1x128xf32> to vector<16x128xf32>
    %193 = arith.addf %191, %192 : vector<16x128xf32>
    %194 = math.tanh %193 : vector<16x128xf32>
    %195 = arith.truncf %194 : vector<16x128xf32> to vector<16x128xbf16>
    %c0_63 = arith.constant 0 : index
    %c0_64 = arith.constant 0 : index
    %196 = vector.load %arg6[%c0_63, %c0_64] : memref<128x128xbf16, #tpu.memory_space<vmem>>, vector<128x128xbf16>
    %cst_65 = arith.constant dense<0.000000e+00> : vector<16x128xf32>
    %197 = tpu.matmul %195, %196, %cst_65 {dimension_numbers = #tpu.dot_dimension_numbers<[1], [0], [0], [1], [0, 0, 1, 1], [], []>} : vector<16x128xbf16>, vector<128x128xbf16>, vector<16x128xf32> -> vector<16x128xf32>
    %c0_66 = arith.constant 0 : index
    %c0_67 = arith.constant 0 : index
    %198 = vector.load %arg7[%c0_66, %c0_67] : memref<1x128xf32, #tpu.memory_space<vmem>>, vector<1x128xf32>
    %199 = vector.broadcast %198 : vector<1x128xf32> to vector<16x128xf32>
    %200 = arith.addf %197, %199 : vector<16x128xf32>
    %c0_68 = arith.constant 0 : index
    %c0_69 = arith.constant 0 : index
    %201 = vector.load %arg8[%c0_68, %c0_69] : memref<16x128xf32, #tpu.memory_space<vmem>>, vector<16x128xf32>
    tpu.vector_store %arg8[%c0_68, %c0_69], %200 {strides = array<i32>} : memref<16x128xf32, #tpu.memory_space<vmem>>, vector<16x128xf32>,
    return
  }
  func.func @transform_0(%arg0: i32) -> (i32, i32, i32) {
    %c0_i32 = arith.constant 0 : i32
    %c0_i32_0 = arith.constant 0 : i32
    %c0_i32_1 = arith.constant 0 : i32
    return %c0_i32, %arg0, %c0_i32_0 : i32, i32, i32
  }
  func.func @transform_1(%arg0: i32) -> (i32, i32) {
    %c0_i32 = arith.constant 0 : i32
    %c0_i32_0 = arith.constant 0 : i32
    %c0_i32_1 = arith.constant 0 : i32
    return %c0_i32, %c0_i32_0 : i32, i32
  }
  func.func @transform_2(%arg0: i32) -> (i32, i32, i32) {
    %c0_i32 = arith.constant 0 : i32
    %c0_i32_0 = arith.constant 0 : i32
    %c0_i32_1 = arith.constant 0 : i32
    %c0_i32_2 = arith.constant 0 : i32
    return %c0_i32, %c0_i32_0, %c0_i32_1 : i32, i32, i32
  }
  func.func @transform_3(%arg0: i32) -> (i32, i32, i32) {
    %c0_i32 = arith.constant 0 : i32
    %c0_i32_0 = arith.constant 0 : i32
    %c0_i32_1 = arith.constant 0 : i32
    %c0_i32_2 = arith.constant 0 : i32
    return %c0_i32, %c0_i32_0, %c0_i32_1 : i32, i32, i32
  }
  func.func @transform_4(%arg0: i32) -> (i32, i32, i32) {
    %c0_i32 = arith.constant 0 : i32
    %c0_i32_0 = arith.constant 0 : i32
    %c0_i32_1 = arith.constant 0 : i32
    %c0_i32_2 = arith.constant 0 : i32
    return %c0_i32, %c0_i32_0, %c0_i32_1 : i32, i32, i32
  }
  func.func @transform_5(%arg0: i32) -> (i32, i32) {
    %c0_i32 = arith.constant 0 : i32
    %c0_i32_0 = arith.constant 0 : i32
    %c0_i32_1 = arith.constant 0 : i32
    return %c0_i32, %c0_i32_0 : i32, i32
  }
  func.func @transform_6(%arg0: i32) -> (i32, i32) {
    %c0_i32 = arith.constant 0 : i32
    %c0_i32_0 = arith.constant 0 : i32
    %c0_i32_1 = arith.constant 0 : i32
    return %c0_i32, %c0_i32_0 : i32, i32
  }
  func.func @transform_7(%arg0: i32) -> (i32, i32) {
    %c0_i32 = arith.constant 0 : i32
    %c0_i32_0 = arith.constant 0 : i32
    return %arg0, %c0_i32 : i32, i32
  }
}

</mosaic_0001>

<llo_original>
// kernel: rnn_forward.1
$region0: #{rnn_forward.1}
  #allocation0 [shape = 'u32[]', space=smem, size = 0x4, offset = 0x4, fixed_abs, tag = 'smem constant byte address 0x4 - core index']
  #allocation1 [shape = 'u32[144,128]{1,0:T(1,128)}', space=vmem, size = 0x12000, scoped, tag = 'internal scratch']
  %s0 = inlined_call_operand.vmem [shape: bf16[8,16,128], index: 0, kind: input, shape index: {}]
  %s1 = inlined_call_operand.hbm [shape: bf16[128,128], index: 1, kind: input, shape index: {}]
  %s2 = inlined_call_operand.hbm [shape: bf16[2,128,128], index: 2, kind: input, shape index: {}]
  %s3 = inlined_call_operand.vmem [shape: bf16[3,128,128], index: 3, kind: input, shape index: {}]
  %s4 = inlined_call_operand.vmem [shape: f32[3,1,128], index: 4, kind: input, shape index: {}]
  %s5 = inlined_call_operand.hbm [shape: bf16[128,128], index: 5, kind: input, shape index: {}]
  %s6 = inlined_call_operand.vmem [shape: f32[1,128], index: 6, kind: input, shape index: {}]
  %s7 = inlined_call_operand.vmem [shape: f32[16,128], index: 7, kind: output, shape index: {}]
  %s8 = sld [smem:[#allocation0]]
  $region50: #{rnn_forward.1} parent=0
    _
  %s10 = ssub.s32 1, %s8
  %s11 = scalar_select 0, %s10, %s8
  $region1: #{rnn_forward.1} parent=0
    #allocation2 [shape = 'u8[32768]{0}', space=vmem, size = 0x8000, scoped, tag = 'input window, operand 1, single buffered']
    #allocation3 [shape = 's32[1]{0}', space=sflag, size = 0x4, scoped, tag = 'scoped memory for rnn_forward.1']
    #allocation4 [shape = 'u8[65536]{0}', space=vmem, size = 0x10000, scoped, tag = 'input window, operand 2, single buffered']
    #allocation5 [shape = 's32[1]{0}', space=sflag, size = 0x4, scoped, tag = 'scoped memory for rnn_forward.1']
    #allocation6 [shape = 'u8[32768]{0}', space=vmem, size = 0x8000, scoped, tag = 'input window, operand 5, single buffered']
    %12 = vsyncpa [#allocation3], 0
    %13 = vsyncpa [#allocation5], 0
    // Predicated region
    $region2: #{rnn_forward.1} parent=1 // pred_check
      _
    $region3: #{rnn_forward.1} parent=1 // pred_check_branch
      %15 = sbr.rel (0) target = $region5
    $region4: #{rnn_forward.1} parent=1 // pred_region
      _
    $region5: #{rnn_forward.1} parent=1 // pred_fallthru
      _
    // Predicated region
    $region6: #{rnn_forward.1} parent=1 // pred_check
      _
    $region7: #{rnn_forward.1} parent=1 // pred_check_branch
      %17 = sbr.rel (0) target = $region9
    $region8: #{rnn_forward.1} parent=1 // pred_region
      %s19 = ssub.s32 1024, 1024
      %20 = vsyncadd [#allocation3], %s19
      %s21 = sshll.u32 [#allocation2], 4
      %s22 = int_to_ptr.vmem [resolvable:$true] %s21
      %27 = dma.hbm_to_vmem [thread:$0]  %s1, 1024, %s22, [#allocation3], 64, 64, 4
    $region9: #{rnn_forward.1} parent=1 // pred_fallthru
      _
    // Predicated region
    $region10: #{rnn_forward.1} parent=1 // pred_check
      _
    $region11: #{rnn_forward.1} parent=1 // pred_check_branch
      %29 = sbr.rel (0) target = $region13
    $region12: #{rnn_forward.1} parent=1 // pred_region
      %s31 = ssub.s32 2048, 2048
      %32 = vsyncadd [#allocation5], %s31
      %s33 = sshll.u32 [#allocation4], 4
      %s34 = int_to_ptr.vmem [resolvable:$true] %s33
      %39 = dma.hbm_to_vmem [thread:$0]  %s2, 2048, %s34, [#allocation5], 64, 64, 4
    $region13: #{rnn_forward.1} parent=1 // pred_fallthru
      _
    // Predicated region
    $region14: #{rnn_forward.1} parent=1 // pred_check
      _
    $region15: #{rnn_forward.1} parent=1 // pred_check_branch
      %41 = sbr.rel (0) target = $region17
    $region16: #{rnn_forward.1} parent=1 // pred_region
      _
    $region17: #{rnn_forward.1} parent=1 // pred_fallthru
      _
    // Predicated region
    $region18: #{rnn_forward.1} parent=1 // pred_check
      _
    $region19: #{rnn_forward.1} parent=1 // pred_check_branch
      %43 = sbr.rel (0) target = $region21
    $region20: #{rnn_forward.1} parent=1 // pred_region
      _
    $region21: #{rnn_forward.1} parent=1 // pred_fallthru
      _
    // Predicated region
    $region22: #{rnn_forward.1} parent=1 // pred_check
      _
    $region23: #{rnn_forward.1} parent=1 // pred_check_branch
      %45 = sbr.rel (0) target = $region25
    $region24: #{rnn_forward.1} parent=1 // pred_region
      %s47 = ssub.s32 1024, 1024
      %48 = vsyncadd [#allocation5], %s47
      %s49 = sshll.u32 [#allocation6], 4
      %s50 = int_to_ptr.vmem [resolvable:$true] %s49
      %55 = dma.hbm_to_vmem [thread:$0]  %s5, 1024, %s50, [#allocation5], 64, 64, 4
    $region25: #{rnn_forward.1} parent=1 // pred_fallthru
      _
    // Predicated region
    $region26: #{rnn_forward.1} parent=1 // pred_check
      _
    $region27: #{rnn_forward.1} parent=1 // pred_check_branch
      %57 = sbr.rel (0) target = $region29
    $region28: #{rnn_forward.1} parent=1 // pred_region
      _
    $region29: #{rnn_forward.1} parent=1 // pred_fallthru
      _
    // Predicated region
    $region30: #{rnn_forward.1} parent=1 // pred_check
      _
    $region31: #{rnn_forward.1} parent=1 // pred_check_branch
      %59 = sbr.rel (0) target = $region33
    $region32: #{rnn_forward.1} parent=1 // pred_region
      %60 = dma.done [#allocation3], 1024
    $region33: #{rnn_forward.1} parent=1 // pred_fallthru
      _
    // Predicated region
    $region34: #{rnn_forward.1} parent=1 // pred_check
      _
    $region35: #{rnn_forward.1} parent=1 // pred_check_branch
      %62 = sbr.rel (0) target = $region37
    $region36: #{rnn_forward.1} parent=1 // pred_region
      %63 = dma.done [#allocation5], 2048
    $region37: #{rnn_forward.1} parent=1 // pred_fallthru
      _
    // Predicated region
    $region38: #{rnn_forward.1} parent=1 // pred_check
      _
    $region39: #{rnn_forward.1} parent=1 // pred_check_branch
      %65 = sbr.rel (0) target = $region41
    $region40: #{rnn_forward.1} parent=1 // pred_region
      %66 = dma.done [#allocation5], 1024
    $region41: #{rnn_forward.1} parent=1 // pred_fallthru
      _
    %v68 = vld [vmem:[%s0] sm:$0xf]
    %v69 = vld [vmem:[%s0 + $0x4] sm:$0xf]
    %v70 = vld [vmem:[%s0 + $0x8] sm:$0xf]
    %v71 = vld [vmem:[%s0 + $0xc] sm:$0xf]
    %v72 = vld [vmem:[%s0 + $0x10] sm:$0xf]
    %v73 = vld [vmem:[%s0 + $0x14] sm:$0xf]
    %v74 = vld [vmem:[%s0 + $0x18] sm:$0xf]
    %v75 = vld [vmem:[%s0 + $0x1c] sm:$0xf]
    %v76 = vld [vmem:[%s0 + $0x20] sm:$0xf]
    %v77 = vld [vmem:[%s0 + $0x24] sm:$0xf]
    %v78 = vld [vmem:[%s0 + $0x28] sm:$0xf]
    %v79 = vld [vmem:[%s0 + $0x2c] sm:$0xf]
    %v80 = vld [vmem:[%s0 + $0x30] sm:$0xf]
    %v81 = vld [vmem:[%s0 + $0x34] sm:$0xf]
    %v82 = vld [vmem:[%s0 + $0x38] sm:$0xf]
    %v83 = vld [vmem:[%s0 + $0x3c] sm:$0xf]
    %v84 = vld [vmem:[#allocation2] sm:$0xf]
    %v85 = vld [vmem:[#allocation2 + $0x4] sm:$0xf]
    %v86 = vld [vmem:[#allocation2 + $0x8] sm:$0xf]
    %v87 = vld [vmem:[#allocation2 + $0xc] sm:$0xf]
    %v88 = vld [vmem:[#allocation2 + $0x10] sm:$0xf]
    %v89 = vld [vmem:[#allocation2 + $0x14] sm:$0xf]
    %v90 = vld [vmem:[#allocation2 + $0x18] sm:$0xf]
    %v91 = vld [vmem:[#allocation2 + $0x1c] sm:$0xf]
    %v92 = vld [vmem:[#allocation2 + $0x20] sm:$0xf]
    %v93 = vld [vmem:[#allocation2 + $0x24] sm:$0xf]
    %v94 = vld [vmem:[#allocation2 + $0x28] sm:$0xf]
    %v95 = vld [vmem:[#allocation2 + $0x2c] sm:$0xf]
    %v96 = vld [vmem:[#allocation2 + $0x30] sm:$0xf]
    %v97 = vld [vmem:[#allocation2 + $0x34] sm:$0xf]
    %v98 = vld [vmem:[#allocation2 + $0x38] sm:$0xf]
    %v99 = vld [vmem:[#allocation2 + $0x3c] sm:$0xf]
    %v116 = vunpack.c.l.b16 %v68
    %v117 = vunpack.c.l.b16 %v69
    %v118 = vunpack.c.l.b16 %v70
    %v119 = vunpack.c.l.b16 %v71
    %v120 = vunpack.c.l.b16 %v72
    %v121 = vunpack.c.l.b16 %v73
    %v122 = vunpack.c.l.b16 %v74
    %v123 = vunpack.c.l.b16 %v75
    %v124 = vunpack.c.l.b16 %v76
    %v125 = vunpack.c.l.b16 %v77
    %v126 = vunpack.c.l.b16 %v78
    %v127 = vunpack.c.l.b16 %v79
    %v128 = vunpack.c.l.b16 %v80
    %v129 = vunpack.c.l.b16 %v81
    %v130 = vunpack.c.l.b16 %v82
    %v131 = vunpack.c.l.b16 %v83
    %v132 = vpack.c.b16 %v117, %v116
    %v133 = vpack.c.b16 %v119, %v118
    %v134 = vpack.c.b16 %v121, %v120
    %v135 = vpack.c.b16 %v123, %v122
    %v136 = vpack.c.b16 %v125, %v124
    %v137 = vpack.c.b16 %v127, %v126
    %v138 = vpack.c.b16 %v129, %v128
    %v139 = vpack.c.b16 %v131, %v130
    %v164 = vunpack.c.l.b16 %v84
    %v165 = vunpack.c.l.b16 %v85
    %v166 = vunpack.c.l.b16 %v86
    %v167 = vunpack.c.l.b16 %v87
    %v168 = vunpack.c.l.b16 %v88
    %v169 = vunpack.c.l.b16 %v89
    %v170 = vunpack.c.l.b16 %v90
    %v171 = vunpack.c.l.b16 %v91
    %v172 = vunpack.c.l.b16 %v92
    %v173 = vunpack.c.l.b16 %v93
    %v174 = vunpack.c.l.b16 %v94
    %v175 = vunpack.c.l.b16 %v95
    %v176 = vunpack.c.l.b16 %v96
    %v177 = vunpack.c.l.b16 %v97
    %v178 = vunpack.c.l.b16 %v98
    %v179 = vunpack.c.l.b16 %v99
    %v180 = vpack.c.b16 %v165, %v164
    %v181 = vpack.c.b16 %v167, %v166
    %v182 = vpack.c.b16 %v169, %v168
    %v183 = vpack.c.b16 %v171, %v170
    %v184 = vpack.c.b16 %v173, %v172
    %v185 = vpack.c.b16 %v175, %v174
    %v186 = vpack.c.b16 %v177, %v176
    %v187 = vpack.c.b16 %v179, %v178
    %196 = vmatprep.subr.bf16.mxu0 0
    %197 = vmatpush1.bf16.msra.mxu0 %v187
    %198 = vmatprep.subr.bf16.mxu0 0
    %199 = vmatpush1.bf16.msra.mxu0 %v186
    %200 = vmatprep.subr.bf16.mxu0 0
    %201 = vmatpush1.bf16.msra.mxu0 %v185
    %202 = vmatprep.subr.bf16.mxu0 0
    %203 = vmatpush1.bf16.msra.mxu0 %v184
    %204 = vmatprep.subr.bf16.mxu0 0
    %205 = vmatpush1.bf16.msra.mxu0 %v183
    %206 = vmatprep.subr.bf16.mxu0 0
    %207 = vmatpush1.bf16.msra.mxu0 %v182
    %208 = vmatprep.subr.bf16.mxu0 0
    %209 = vmatpush1.bf16.msra.mxu0 %v181
    %210 = vmatprep.subr.bf16.mxu0 0
    %211 = vmatpush1.bf16.msra.mxu0 %v180
    %212 = vmatprep.subr.bf16.mxu0 0
    %213 = vmatpush2.bf16.msra.mxu0 0
    %214 = vmatprep.subr.bf16.mxu0 0
    %215 = vmatpush2.bf16.msra.mxu0 0
    %216 = vmatprep.subr.bf16.mxu0 0
    %217 = vmatpush2.bf16.msra.mxu0 0
    %218 = vmatprep.subr.bf16.mxu0 0
    %219 = vmatpush2.bf16.msra.mxu0 0
    %220 = vmatprep.subr.bf16.mxu0 0
    %221 = vmatpush2.bf16.msra.mxu0 0
    %222 = vmatprep.subr.bf16.mxu0 0
    %223 = vmatpush2.bf16.msra.mxu0 0
    %224 = vmatprep.subr.bf16.mxu0 0
    %225 = vmatpush2.bf16.msra.mxu0 0
    %226 = vmatprep.subr.bf16.mxu0 0
    %227 = vmatpush2.bf16.msra.mxu0 0
    %228 = vmatprep.mubr.bf16.mxu0 0
    %229 = vmatmul.mubr.bf16.gmra.mxu0 %v132
    %v230 = vpop.f32.mrf.mxu0
    %v231 = vadd.f32 0.0, %v230
    %v232 = vpop.f32.mrf.mxu0
    %v233 = vpop.f32.mrf.mxu0
    %v234 = vadd.f32 0.0, %v233
    %v235 = vpop.f32.mrf.mxu0
    %236 = vmatprep.mubr.bf16.mxu0 0
    %237 = vmatmul.mubr.bf16.gmra.mxu0 %v133
    %v238 = vpop.f32.mrf.mxu0
    %v239 = vadd.f32 0.0, %v238
    %v240 = vpop.f32.mrf.mxu0
    %v241 = vpop.f32.mrf.mxu0
    %v242 = vadd.f32 0.0, %v241
    %v243 = vpop.f32.mrf.mxu0
    %244 = vmatprep.mubr.bf16.mxu0 0
    %245 = vmatmul.mubr.bf16.gmra.mxu0 %v134
    %v246 = vpop.f32.mrf.mxu0
    %v247 = vadd.f32 0.0, %v246
    %v248 = vpop.f32.mrf.mxu0
    %v249 = vpop.f32.mrf.mxu0
    %v250 = vadd.f32 0.0, %v249
    %v251 = vpop.f32.mrf.mxu0
    %252 = vmatprep.mubr.bf16.mxu0 0
    %253 = vmatmul.mubr.bf16.gmra.mxu0 %v135
    %v254 = vpop.f32.mrf.mxu0
    %v255 = vadd.f32 0.0, %v254
    %v256 = vpop.f32.mrf.mxu0
    %v257 = vpop.f32.mrf.mxu0
    %v258 = vadd.f32 0.0, %v257
    %v259 = vpop.f32.mrf.mxu0
    %260 = vmatprep.mubr.bf16.mxu0 0
    %261 = vmatmul.mubr.bf16.gmra.mxu0 %v136
    %v262 = vpop.f32.mrf.mxu0
    %v263 = vadd.f32 0.0, %v262
    %v264 = vpop.f32.mrf.mxu0
    %v265 = vpop.f32.mrf.mxu0
    %v266 = vadd.f32 0.0, %v265
    %v267 = vpop.f32.mrf.mxu0
    %268 = vmatprep.mubr.bf16.mxu0 0
    %269 = vmatmul.mubr.bf16.gmra.mxu0 %v137
    %v270 = vpop.f32.mrf.mxu0
    %v271 = vadd.f32 0.0, %v270
    %v272 = vpop.f32.mrf.mxu0
    %v273 = vpop.f32.mrf.mxu0
    %v274 = vadd.f32 0.0, %v273
    %v275 = vpop.f32.mrf.mxu0
    %276 = vmatprep.mubr.bf16.mxu0 0
    %277 = vmatmul.mubr.bf16.gmra.mxu0 %v138
    %v278 = vpop.f32.mrf.mxu0
    %v279 = vadd.f32 0.0, %v278
    %v280 = vpop.f32.mrf.mxu0
    %v281 = vpop.f32.mrf.mxu0
    %v282 = vadd.f32 0.0, %v281
    %v283 = vpop.f32.mrf.mxu0
    %284 = vmatprep.mubr.bf16.mxu0 0
    %285 = vmatmul.mubr.bf16.gmra.mxu0 %v139
    %v286 = vpop.f32.mrf.mxu0
    %v287 = vadd.f32 0.0, %v286
    %v288 = vpop.f32.mrf.mxu0
    %v289 = vpop.f32.mrf.mxu0
    %v290 = vadd.f32 0.0, %v289
    %v291 = vpop.f32.mrf.mxu0
    %292 = vdwg.mxu0
    %v293 = vld [vmem:[%s3] sm:$0xf]
    %v294 = vld [vmem:[%s3 + $0x4] sm:$0xf]
    %v295 = vld [vmem:[%s3 + $0x8] sm:$0xf]
    %v296 = vld [vmem:[%s3 + $0xc] sm:$0xf]
    %v297 = vld [vmem:[%s3 + $0x10] sm:$0xf]
    %v298 = vld [vmem:[%s3 + $0x14] sm:$0xf]
    %v299 = vld [vmem:[%s3 + $0x18] sm:$0xf]
    %v300 = vld [vmem:[%s3 + $0x1c] sm:$0xf]
    %v301 = vld [vmem:[%s3 + $0x20] sm:$0xf]
    %v302 = vld [vmem:[%s3 + $0x24] sm:$0xf]
    %v303 = vld [vmem:[%s3 + $0x28] sm:$0xf]
    %v304 = vld [vmem:[%s3 + $0x2c] sm:$0xf]
    %v305 = vld [vmem:[%s3 + $0x30] sm:$0xf]
    %v306 = vld [vmem:[%s3 + $0x34] sm:$0xf]
    %v307 = vld [vmem:[%s3 + $0x38] sm:$0xf]
    %v308 = vld [vmem:[%s3 + $0x3c] sm:$0xf]
    %v309 = vld [vmem:[%s4] sm:$0x1]
    %v311 = vlaneseq
    %v312 = vshrl.u32 %v311, 7
    %v313 = vsub.s32 0, %v312
    %v314 = vrot.slane %v309, %v313
    %v316 = vadd.f32 %v231, %v314
    %v317 = vadd.f32 %v234, %v314
    %v318 = vtanh.pop %v316
    %v319 = vtanh.pop %v317
    %v320 = vpack.c.bf16 %v319, %v318
    %v337 = vunpack.c.l.b16 %v293
    %v338 = vunpack.c.l.b16 %v294
    %v339 = vunpack.c.l.b16 %v295
    %v340 = vunpack.c.l.b16 %v296
    %v341 = vunpack.c.l.b16 %v297
    %v342 = vunpack.c.l.b16 %v298
    %v343 = vunpack.c.l.b16 %v299
    %v344 = vunpack.c.l.b16 %v300
    %v345 = vunpack.c.l.b16 %v301
    %v346 = vunpack.c.l.b16 %v302
    %v347 = vunpack.c.l.b16 %v303
    %v348 = vunpack.c.l.b16 %v304
    %v349 = vunpack.c.l.b16 %v305
    %v350 = vunpack.c.l.b16 %v306
    %v351 = vunpack.c.l.b16 %v307
    %v352 = vunpack.c.l.b16 %v308
    %v353 = vpack.c.b16 %v338, %v337
    %v354 = vpack.c.b16 %v340, %v339
    %v355 = vpack.c.b16 %v342, %v341
    %v356 = vpack.c.b16 %v344, %v343
    %v357 = vpack.c.b16 %v346, %v345
    %v358 = vpack.c.b16 %v348, %v347
    %v359 = vpack.c.b16 %v350, %v349
    %v360 = vpack.c.b16 %v352, %v351
    %369 = vmatprep.subr.bf16.mxu0 0
    %370 = vmatpush1.bf16.msra.mxu0 %v360
    %371 = vmatprep.subr.bf16.mxu0 0
    %372 = vmatpush1.bf16.msra.mxu0 %v359
    %373 = vmatprep.subr.bf16.mxu0 0
    %374 = vmatpush1.bf16.msra.mxu0 %v358
    %375 = vmatprep.subr.bf16.mxu0 0
    %376 = vmatpush1.bf16.msra.mxu0 %v357
    %377 = vmatprep.subr.bf16.mxu0 0
    %378 = vmatpush1.bf16.msra.mxu0 %v356
    %379 = vmatprep.subr.bf16.mxu0 0
    %380 = vmatpush1.bf16.msra.mxu0 %v355
    %381 = vmatprep.subr.bf16.mxu0 0
    %382 = vmatpush1.bf16.msra.mxu0 %v354
    %383 = vmatprep.subr.bf16.mxu0 0
    %384 = vmatpush1.bf16.msra.mxu0 %v353
    %385 = vmatprep.subr.bf16.mxu0 0
    %386 = vmatpush2.bf16.msra.mxu0 0
    %387 = vmatprep.subr.bf16.mxu0 0
    %388 = vmatpush2.bf16.msra.mxu0 0
    %389 = vmatprep.subr.bf16.mxu0 0
    %390 = vmatpush2.bf16.msra.mxu0 0
    %391 = vmatprep.subr.bf16.mxu0 0
    %392 = vmatpush2.bf16.msra.mxu0 0
    %393 = vmatprep.subr.bf16.mxu0 0
    %394 = vmatpush2.bf16.msra.mxu0 0
    %395 = vmatprep.subr.bf16.mxu0 0
    %396 = vmatpush2.bf16.msra.mxu0 0
    %397 = vmatprep.subr.bf16.mxu0 0
    %398 = vmatpush2.bf16.msra.mxu0 0
    %399 = vmatprep.subr.bf16.mxu0 0
    %400 = vmatpush2.bf16.msra.mxu0 0
    %401 = vmatprep.mubr.bf16.mxu0 0
    %402 = vmatmul.mubr.bf16.gmra.mxu0 %v320
    %v403 = vpop.f32.mrf.mxu0
    %v404 = vadd.f32 0.0, %v403
    %v405 = vpop.f32.mrf.mxu0
    %v406 = vpop.f32.mrf.mxu0
    %v407 = vadd.f32 0.0, %v406
    %v408 = vpop.f32.mrf.mxu0
    %409 = vdwg.mxu0
    %v410 = vadd.f32 %v239, %v404
    %v411 = vadd.f32 %v242, %v407
    %v412 = vadd.f32 %v410, %v314
    %v413 = vadd.f32 %v411, %v314
    %v414 = vtanh.pop %v412
    %v415 = vtanh.pop %v413
    %v416 = vpack.c.bf16 %v415, %v414
    %417 = vmatprep.subr.bf16.mxu0 0
    %418 = vmatpush1.bf16.msra.mxu0 %v360
    %419 = vmatprep.subr.bf16.mxu0 0
    %420 = vmatpush1.bf16.msra.mxu0 %v359
    %421 = vmatprep.subr.bf16.mxu0 0
    %422 = vmatpush1.bf16.msra.mxu0 %v358
    %423 = vmatprep.subr.bf16.mxu0 0
    %424 = vmatpush1.bf16.msra.mxu0 %v357
    %425 = vmatprep.subr.bf16.mxu0 0
    %426 = vmatpush1.bf16.msra.mxu0 %v356
    %427 = vmatprep.subr.bf16.mxu0 0
    %428 = vmatpush1.bf16.msra.mxu0 %v355
    %429 = vmatprep.subr.bf16.mxu0 0
    %430 = vmatpush1.bf16.msra.mxu0 %v354
    %431 = vmatprep.subr.bf16.mxu0 0
    %432 = vmatpush1.bf16.msra.mxu0 %v353
    %433 = vmatprep.subr.bf16.mxu0 0
    %434 = vmatpush2.bf16.msra.mxu0 0
    %435 = vmatprep.subr.bf16.mxu0 0
    %436 = vmatpush2.bf16.msra.mxu0 0
    %437 = vmatprep.subr.bf16.mxu0 0
    %438 = vmatpush2.bf16.msra.mxu0 0
    %439 = vmatprep.subr.bf16.mxu0 0
    %440 = vmatpush2.bf16.msra.mxu0 0
    %441 = vmatprep.subr.bf16.mxu0 0
    %442 = vmatpush2.bf16.msra.mxu0 0
    %443 = vmatprep.subr.bf16.mxu0 0
    %444 = vmatpush2.bf16.msra.mxu0 0
    %445 = vmatprep.subr.bf16.mxu0 0
    %446 = vmatpush2.bf16.msra.mxu0 0
    %447 = vmatprep.subr.bf16.mxu0 0
    %448 = vmatpush2.bf16.msra.mxu0 0
    %449 = vmatprep.mubr.bf16.mxu0 0
    %450 = vmatmul.mubr.bf16.gmra.mxu0 %v416
    %v451 = vpop.f32.mrf.mxu0
    %v452 = vadd.f32 0.0, %v451
    %v453 = vpop.f32.mrf.mxu0
    %v454 = vpop.f32.mrf.mxu0
    %v455 = vadd.f32 0.0, %v454
    %v456 = vpop.f32.mrf.mxu0
    %457 = vdwg.mxu0
    %v458 = vadd.f32 %v247, %v452
    %v459 = vadd.f32 %v250, %v455
    %v460 = vadd.f32 %v458, %v314
    %v461 = vadd.f32 %v459, %v314
    %v462 = vtanh.pop %v460
    %v463 = vtanh.pop %v461
    %v464 = vpack.c.bf16 %v463, %v462
    %465 = vmatprep.subr.bf16.mxu0 0
    %466 = vmatpush1.bf16.msra.mxu0 %v360
    %467 = vmatprep.subr.bf16.mxu0 0
    %468 = vmatpush1.bf16.msra.mxu0 %v359
    %469 = vmatprep.subr.bf16.mxu0 0
    %470 = vmatpush1.bf16.msra.mxu0 %v358
    %471 = vmatprep.subr.bf16.mxu0 0
    %472 = vmatpush1.bf16.msra.mxu0 %v357
    %473 = vmatprep.subr.bf16.mxu0 0
    %474 = vmatpush1.bf16.msra.mxu0 %v356
    %475 = vmatprep.subr.bf16.mxu0 0
    %476 = vmatpush1.bf16.msra.mxu0 %v355
    %477 = vmatprep.subr.bf16.mxu0 0
    %478 = vmatpush1.bf16.msra.mxu0 %v354
    %479 = vmatprep.subr.bf16.mxu0 0
    %480 = vmatpush1.bf16.msra.mxu0 %v353
    %481 = vmatprep.subr.bf16.mxu0 0
    %482 = vmatpush2.bf16.msra.mxu0 0
    %483 = vmatprep.subr.bf16.mxu0 0
    %484 = vmatpush2.bf16.msra.mxu0 0
    %485 = vmatprep.subr.bf16.mxu0 0
    %486 = vmatpush2.bf16.msra.mxu0 0
    %487 = vmatprep.subr.bf16.mxu0 0
    %488 = vmatpush2.bf16.msra.mxu0 0
    %489 = vmatprep.subr.bf16.mxu0 0
    %490 = vmatpush2.bf16.msra.mxu0 0
    %491 = vmatprep.subr.bf16.mxu0 0
    %492 = vmatpush2.bf16.msra.mxu0 0
    %493 = vmatprep.subr.bf16.mxu0 0
    %494 = vmatpush2.bf16.msra.mxu0 0
    %495 = vmatprep.subr.bf16.mxu0 0
    %496 = vmatpush2.bf16.msra.mxu0 0
    %497 = vmatprep.mubr.bf16.mxu0 0
    %498 = vmatmul.mubr.bf16.gmra.mxu0 %v464
    %v499 = vpop.f32.mrf.mxu0
    %v500 = vadd.f32 0.0, %v499
    %v501 = vpop.f32.mrf.mxu0
    %v502 = vpop.f32.mrf.mxu0
    %v503 = vadd.f32 0.0, %v502
    %v504 = vpop.f32.mrf.mxu0
    %505 = vdwg.mxu0
    %v506 = vadd.f32 %v255, %v500
    %v507 = vadd.f32 %v258, %v503
    %v508 = vadd.f32 %v506, %v314
    %v509 = vadd.f32 %v507, %v314
    %v510 = vtanh.pop %v508
    %v511 = vtanh.pop %v509
    %v512 = vpack.c.bf16 %v511, %v510
    %513 = vmatprep.subr.bf16.mxu0 0
    %514 = vmatpush1.bf16.msra.mxu0 %v360
    %515 = vmatprep.subr.bf16.mxu0 0
    %516 = vmatpush1.bf16.msra.mxu0 %v359
    %517 = vmatprep.subr.bf16.mxu0 0
    %518 = vmatpush1.bf16.msra.mxu0 %v358
    %519 = vmatprep.subr.bf16.mxu0 0
    %520 = vmatpush1.bf16.msra.mxu0 %v357
    %521 = vmatprep.subr.bf16.mxu0 0
    %522 = vmatpush1.bf16.msra.mxu0 %v356
    %523 = vmatprep.subr.bf16.mxu0 0
    %524 = vmatpush1.bf16.msra.mxu0 %v355
    %525 = vmatprep.subr.bf16.mxu0 0
    %526 = vmatpush1.bf16.msra.mxu0 %v354
    %527 = vmatprep.subr.bf16.mxu0 0
    %528 = vmatpush1.bf16.msra.mxu0 %v353
    %529 = vmatprep.subr.bf16.mxu0 0
    %530 = vmatpush2.bf16.msra.mxu0 0
    %531 = vmatprep.subr.bf16.mxu0 0
    %532 = vmatpush2.bf16.msra.mxu0 0
    %533 = vmatprep.subr.bf16.mxu0 0
    %534 = vmatpush2.bf16.msra.mxu0 0
    %535 = vmatprep.subr.bf16.mxu0 0
    %536 = vmatpush2.bf16.msra.mxu0 0
    %537 = vmatprep.subr.bf16.mxu0 0
    %538 = vmatpush2.bf16.msra.mxu0 0
    %539 = vmatprep.subr.bf16.mxu0 0
    %540 = vmatpush2.bf16.msra.mxu0 0
    %541 = vmatprep.subr.bf16.mxu0 0
    %542 = vmatpush2.bf16.msra.mxu0 0
    %543 = vmatprep.subr.bf16.mxu0 0
    %544 = vmatpush2.bf16.msra.mxu0 0
    %545 = vmatprep.mubr.bf16.mxu0 0
    %546 = vmatmul.mubr.bf16.gmra.mxu0 %v512
    %v547 = vpop.f32.mrf.mxu0
    %v548 = vadd.f32 0.0, %v547
    %v549 = vpop.f32.mrf.mxu0
    %v550 = vpop.f32.mrf.mxu0
    %v551 = vadd.f32 0.0, %v550
    %v552 = vpop.f32.mrf.mxu0
    %553 = vdwg.mxu0
    %v554 = vadd.f32 %v263, %v548
    %v555 = vadd.f32 %v266, %v551
    %v556 = vadd.f32 %v554, %v314
    %v557 = vadd.f32 %v555, %v314
    %v558 = vtanh.pop %v556
    %v559 = vtanh.pop %v557
    %v560 = vpack.c.bf16 %v559, %v558
    %561 = vmatprep.subr.bf16.mxu0 0
    %562 = vmatpush1.bf16.msra.mxu0 %v360
    %563 = vmatprep.subr.bf16.mxu0 0
    %564 = vmatpush1.bf16.msra.mxu0 %v359
    %565 = vmatprep.subr.bf16.mxu0 0
    %566 = vmatpush1.bf16.msra.mxu0 %v358
    %567 = vmatprep.subr.bf16.mxu0 0
    %568 = vmatpush1.bf16.msra.mxu0 %v357
    %569 = vmatprep.subr.bf16.mxu0 0
    %570 = vmatpush1.bf16.msra.mxu0 %v356
    %571 = vmatprep.subr.bf16.mxu0 0
    %572 = vmatpush1.bf16.msra.mxu0 %v355
    %573 = vmatprep.subr.bf16.mxu0 0
    %574 = vmatpush1.bf16.msra.mxu0 %v354
    %575 = vmatprep.subr.bf16.mxu0 0
    %576 = vmatpush1.bf16.msra.mxu0 %v353
    %577 = vmatprep.subr.bf16.mxu0 0
    %578 = vmatpush2.bf16.msra.mxu0 0
    %579 = vmatprep.subr.bf16.mxu0 0
    %580 = vmatpush2.bf16.msra.mxu0 0
    %581 = vmatprep.subr.bf16.mxu0 0
    %582 = vmatpush2.bf16.msra.mxu0 0
    %583 = vmatprep.subr.bf16.mxu0 0
    %584 = vmatpush2.bf16.msra.mxu0 0
    %585 = vmatprep.subr.bf16.mxu0 0
    %586 = vmatpush2.bf16.msra.mxu0 0
    %587 = vmatprep.subr.bf16.mxu0 0
    %588 = vmatpush2.bf16.msra.mxu0 0
    %589 = vmatprep.subr.bf16.mxu0 0
    %590 = vmatpush2.bf16.msra.mxu0 0
    %591 = vmatprep.subr.bf16.mxu0 0
    %592 = vmatpush2.bf16.msra.mxu0 0
    %593 = vmatprep.mubr.bf16.mxu0 0
    %594 = vmatmul.mubr.bf16.gmra.mxu0 %v560
    %v595 = vpop.f32.mrf.mxu0
    %v596 = vadd.f32 0.0, %v595
    %v597 = vpop.f32.mrf.mxu0
    %v598 = vpop.f32.mrf.mxu0
    %v599 = vadd.f32 0.0, %v598
    %v600 = vpop.f32.mrf.mxu0
    %601 = vdwg.mxu0
    %v602 = vadd.f32 %v271, %v596
    %v603 = vadd.f32 %v274, %v599
    %v604 = vadd.f32 %v602, %v314
    %v605 = vadd.f32 %v603, %v314
    %v606 = vtanh.pop %v604
    %v607 = vtanh.pop %v605
    %v608 = vpack.c.bf16 %v607, %v606
    %609 = vmatprep.subr.bf16.mxu0 0
    %610 = vmatpush1.bf16.msra.mxu0 %v360
    %611 = vmatprep.subr.bf16.mxu0 0
    %612 = vmatpush1.bf16.msra.mxu0 %v359
    %613 = vmatprep.subr.bf16.mxu0 0
    %614 = vmatpush1.bf16.msra.mxu0 %v358
    %615 = vmatprep.subr.bf16.mxu0 0
    %616 = vmatpush1.bf16.msra.mxu0 %v357
    %617 = vmatprep.subr.bf16.mxu0 0
    %618 = vmatpush1.bf16.msra.mxu0 %v356
    %619 = vmatprep.subr.bf16.mxu0 0
    %620 = vmatpush1.bf16.msra.mxu0 %v355
    %621 = vmatprep.subr.bf16.mxu0 0
    %622 = vmatpush1.bf16.msra.mxu0 %v354
    %623 = vmatprep.subr.bf16.mxu0 0
    %624 = vmatpush1.bf16.msra.mxu0 %v353
    %625 = vmatprep.subr.bf16.mxu0 0
    %626 = vmatpush2.bf16.msra.mxu0 0
    %627 = vmatprep.subr.bf16.mxu0 0
    %628 = vmatpush2.bf16.msra.mxu0 0
    %629 = vmatprep.subr.bf16.mxu0 0
    %630 = vmatpush2.bf16.msra.mxu0 0
    %631 = vmatprep.subr.bf16.mxu0 0
    %632 = vmatpush2.bf16.msra.mxu0 0
    %633 = vmatprep.subr.bf16.mxu0 0
    %634 = vmatpush2.bf16.msra.mxu0 0
    %635 = vmatprep.subr.bf16.mxu0 0
    %636 = vmatpush2.bf16.msra.mxu0 0
    %637 = vmatprep.subr.bf16.mxu0 0
    %638 = vmatpush2.bf16.msra.mxu0 0
    %639 = vmatprep.subr.bf16.mxu0 0
    %640 = vmatpush2.bf16.msra.mxu0 0
    %641 = vmatprep.mubr.bf16.mxu0 0
    %642 = vmatmul.mubr.bf16.gmra.mxu0 %v608
    %v643 = vpop.f32.mrf.mxu0
    %v644 = vadd.f32 0.0, %v643
    %v645 = vpop.f32.mrf.mxu0
    %v646 = vpop.f32.mrf.mxu0
    %v647 = vadd.f32 0.0, %v646
    %v648 = vpop.f32.mrf.mxu0
    %649 = vdwg.mxu0
    %v650 = vadd.f32 %v279, %v644
    %v651 = vadd.f32 %v282, %v647
    %v652 = vadd.f32 %v650, %v314
    %v653 = vadd.f32 %v651, %v314
    %v654 = vtanh.pop %v652
    %v655 = vtanh.pop %v653
    %v656 = vpack.c.bf16 %v655, %v654
    %657 = vmatprep.subr.bf16.mxu0 0
    %658 = vmatpush1.bf16.msra.mxu0 %v360
    %659 = vmatprep.subr.bf16.mxu0 0
    %660 = vmatpush1.bf16.msra.mxu0 %v359
    %661 = vmatprep.subr.bf16.mxu0 0
    %662 = vmatpush1.bf16.msra.mxu0 %v358
    %663 = vmatprep.subr.bf16.mxu0 0
    %664 = vmatpush1.bf16.msra.mxu0 %v357
    %665 = vmatprep.subr.bf16.mxu0 0
    %666 = vmatpush1.bf16.msra.mxu0 %v356
    %667 = vmatprep.subr.bf16.mxu0 0
    %668 = vmatpush1.bf16.msra.mxu0 %v355
    %669 = vmatprep.subr.bf16.mxu0 0
    %670 = vmatpush1.bf16.msra.mxu0 %v354
    %671 = vmatprep.subr.bf16.mxu0 0
    %672 = vmatpush1.bf16.msra.mxu0 %v353
    %673 = vmatprep.subr.bf16.mxu0 0
    %674 = vmatpush2.bf16.msra.mxu0 0
    %675 = vmatprep.subr.bf16.mxu0 0
    %676 = vmatpush2.bf16.msra.mxu0 0
    %677 = vmatprep.subr.bf16.mxu0 0
    %678 = vmatpush2.bf16.msra.mxu0 0
    %679 = vmatprep.subr.bf16.mxu0 0
    %680 = vmatpush2.bf16.msra.mxu0 0
    %681 = vmatprep.subr.bf16.mxu0 0
    %682 = vmatpush2.bf16.msra.mxu0 0
    %683 = vmatprep.subr.bf16.mxu0 0
    %684 = vmatpush2.bf16.msra.mxu0 0
    %685 = vmatprep.subr.bf16.mxu0 0
    %686 = vmatpush2.bf16.msra.mxu0 0
    %687 = vmatprep.subr.bf16.mxu0 0
    %688 = vmatpush2.bf16.msra.mxu0 0
    %689 = vmatprep.mubr.bf16.mxu0 0
    %690 = vmatmul.mubr.bf16.gmra.mxu0 %v656
    %v691 = vpop.f32.mrf.mxu0
    %v692 = vadd.f32 0.0, %v691
    %v693 = vpop.f32.mrf.mxu0
    %v694 = vpop.f32.mrf.mxu0
    %v695 = vadd.f32 0.0, %v694
    %v696 = vpop.f32.mrf.mxu0
    %697 = vdwg.mxu0
    %v698 = vadd.f32 %v287, %v692
    %v699 = vadd.f32 %v290, %v695
    %v700 = vadd.f32 %v698, %v314
    %v701 = vadd.f32 %v699, %v314
    %v702 = vtanh.pop %v700
    %v703 = vtanh.pop %v701
    %v704 = vld [vmem:[#allocation4] sm:$0xf]
    %v705 = vld [vmem:[#allocation4 + $0x4] sm:$0xf]
    %v706 = vld [vmem:[#allocation4 + $0x8] sm:$0xf]
    %v707 = vld [vmem:[#allocation4 + $0xc] sm:$0xf]
    %v708 = vld [vmem:[#allocation4 + $0x10] sm:$0xf]
    %v709 = vld [vmem:[#allocation4 + $0x14] sm:$0xf]
    %v710 = vld [vmem:[#allocation4 + $0x18] sm:$0xf]
    %v711 = vld [vmem:[#allocation4 + $0x1c] sm:$0xf]
    %v712 = vld [vmem:[#allocation4 + $0x20] sm:$0xf]
    %v713 = vld [vmem:[#allocation4 + $0x24] sm:$0xf]
    %v714 = vld [vmem:[#allocation4 + $0x28] sm:$0xf]
    %v715 = vld [vmem:[#allocation4 + $0x2c] sm:$0xf]
    %v716 = vld [vmem:[#allocation4 + $0x30] sm:$0xf]
    %v717 = vld [vmem:[#allocation4 + $0x34] sm:$0xf]
    %v718 = vld [vmem:[#allocation4 + $0x38] sm:$0xf]
    %v719 = vld [vmem:[#allocation4 + $0x3c] sm:$0xf]
    %s720 = scalar_lea.vmem %s3, 64
    %v721 = vld [vmem:[%s720] sm:$0xf]
    %v722 = vld [vmem:[%s720 + $0x4] sm:$0xf]
    %v723 = vld [vmem:[%s720 + $0x8] sm:$0xf]
    %v724 = vld [vmem:[%s720 + $0xc] sm:$0xf]
    %v725 = vld [vmem:[%s720 + $0x10] sm:$0xf]
    %v726 = vld [vmem:[%s720 + $0x14] sm:$0xf]
    %v727 = vld [vmem:[%s720 + $0x18] sm:$0xf]
    %v728 = vld [vmem:[%s720 + $0x1c] sm:$0xf]
    %v729 = vld [vmem:[%s720 + $0x20] sm:$0xf]
    %v730 = vld [vmem:[%s720 + $0x24] sm:$0xf]
    %v731 = vld [vmem:[%s720 + $0x28] sm:$0xf]
    %v732 = vld [vmem:[%s720 + $0x2c] sm:$0xf]
    %v733 = vld [vmem:[%s720 + $0x30] sm:$0xf]
    %v734 = vld [vmem:[%s720 + $0x34] sm:$0xf]
    %v735 = vld [vmem:[%s720 + $0x38] sm:$0xf]
    %v736 = vld [vmem:[%s720 + $0x3c] sm:$0xf]
    %s737 = scalar_lea.vmem %s4, 1
    %v738 = vld [vmem:[%s737] sm:$0x1]
    %v740 = vlaneseq
    %v741 = vshrl.u32 %v740, 7
    %v742 = vsub.s32 0, %v741
    %v743 = vrot.slane %v738, %v742
    %v761 = vunpack.c.l.b16 %v704
    %v762 = vunpack.c.l.b16 %v705
    %v763 = vunpack.c.l.b16 %v706
    %v764 = vunpack.c.l.b16 %v707
    %v765 = vunpack.c.l.b16 %v708
    %v766 = vunpack.c.l.b16 %v709
    %v767 = vunpack.c.l.b16 %v710
    %v768 = vunpack.c.l.b16 %v711
    %v769 = vunpack.c.l.b16 %v712
    %v770 = vunpack.c.l.b16 %v713
    %v771 = vunpack.c.l.b16 %v714
    %v772 = vunpack.c.l.b16 %v715
    %v773 = vunpack.c.l.b16 %v716
    %v774 = vunpack.c.l.b16 %v717
    %v775 = vunpack.c.l.b16 %v718
    %v776 = vunpack.c.l.b16 %v719
    %v777 = vpack.c.b16 %v762, %v761
    %v778 = vpack.c.b16 %v764, %v763
    %v779 = vpack.c.b16 %v766, %v765
    %v780 = vpack.c.b16 %v768, %v767
    %v781 = vpack.c.b16 %v770, %v769
    %v782 = vpack.c.b16 %v772, %v771
    %v783 = vpack.c.b16 %v774, %v773
    %v784 = vpack.c.b16 %v776, %v775
    %793 = vmatprep.subr.bf16.mxu0 0
    %794 = vmatpush1.bf16.msra.mxu0 %v784
    %795 = vmatprep.subr.bf16.mxu0 0
    %796 = vmatpush1.bf16.msra.mxu0 %v783
    %797 = vmatprep.subr.bf16.mxu0 0
    %798 = vmatpush1.bf16.msra.mxu0 %v782
    %799 = vmatprep.subr.bf16.mxu0 0
    %800 = vmatpush1.bf16.msra.mxu0 %v781
    %801 = vmatprep.subr.bf16.mxu0 0
    %802 = vmatpush1.bf16.msra.mxu0 %v780
    %803 = vmatprep.subr.bf16.mxu0 0
    %804 = vmatpush1.bf16.msra.mxu0 %v779
    %805 = vmatprep.subr.bf16.mxu0 0
    %806 = vmatpush1.bf16.msra.mxu0 %v778
    %807 = vmatprep.subr.bf16.mxu0 0
    %808 = vmatpush1.bf16.msra.mxu0 %v777
    %809 = vmatprep.subr.bf16.mxu0 0
    %810 = vmatpush2.bf16.msra.mxu0 0
    %811 = vmatprep.subr.bf16.mxu0 0
    %812 = vmatpush2.bf16.msra.mxu0 0
    %813 = vmatprep.subr.bf16.mxu0 0
    %814 = vmatpush2.bf16.msra.mxu0 0
    %815 = vmatprep.subr.bf16.mxu0 0
    %816 = vmatpush2.bf16.msra.mxu0 0
    %817 = vmatprep.subr.bf16.mxu0 0
    %818 = vmatpush2.bf16.msra.mxu0 0
    %819 = vmatprep.subr.bf16.mxu0 0
    %820 = vmatpush2.bf16.msra.mxu0 0
    %821 = vmatprep.subr.bf16.mxu0 0
    %822 = vmatpush2.bf16.msra.mxu0 0
    %823 = vmatprep.subr.bf16.mxu0 0
    %824 = vmatpush2.bf16.msra.mxu0 0
    %825 = vmatprep.mubr.bf16.mxu0 0
    %826 = vmatmul.mubr.bf16.gmra.mxu0 %v320
    %v827 = vpop.f32.mrf.mxu0
    %v828 = vadd.f32 %v743, %v827
    %v829 = vpop.f32.mrf.mxu0
    %v830 = vpop.f32.mrf.mxu0
    %v831 = vadd.f32 %v743, %v830
    %v832 = vpop.f32.mrf.mxu0
    %833 = vdwg.mxu0
    %v834 = vtanh.pop %v828
    %v835 = vtanh.pop %v831
    %v836 = vpack.c.bf16 %v835, %v834
    %v853 = vunpack.c.l.b16 %v721
    %v854 = vunpack.c.l.b16 %v722
    %v855 = vunpack.c.l.b16 %v723
    %v856 = vunpack.c.l.b16 %v724
    %v857 = vunpack.c.l.b16 %v725
    %v858 = vunpack.c.l.b16 %v726
    %v859 = vunpack.c.l.b16 %v727
    %v860 = vunpack.c.l.b16 %v728
    %v861 = vunpack.c.l.b16 %v729
    %v862 = vunpack.c.l.b16 %v730
    %v863 = vunpack.c.l.b16 %v731
    %v864 = vunpack.c.l.b16 %v732
    %v865 = vunpack.c.l.b16 %v733
    %v866 = vunpack.c.l.b16 %v734
    %v867 = vunpack.c.l.b16 %v735
    %v868 = vunpack.c.l.b16 %v736
    %v869 = vpack.c.b16 %v854, %v853
    %v870 = vpack.c.b16 %v856, %v855
    %v871 = vpack.c.b16 %v858, %v857
    %v872 = vpack.c.b16 %v860, %v859
    %v873 = vpack.c.b16 %v862, %v861
    %v874 = vpack.c.b16 %v864, %v863
    %v875 = vpack.c.b16 %v866, %v865
    %v876 = vpack.c.b16 %v868, %v867
    %885 = vmatprep.subr.bf16.mxu0 0
    %886 = vmatpush1.bf16.msra.mxu0 %v876
    %887 = vmatprep.subr.bf16.mxu0 0
    %888 = vmatpush1.bf16.msra.mxu0 %v875
    %889 = vmatprep.subr.bf16.mxu0 0
    %890 = vmatpush1.bf16.msra.mxu0 %v874
    %891 = vmatprep.subr.bf16.mxu0 0
    %892 = vmatpush1.bf16.msra.mxu0 %v873
    %893 = vmatprep.subr.bf16.mxu0 0
    %894 = vmatpush1.bf16.msra.mxu0 %v872
    %895 = vmatprep.subr.bf16.mxu0 0
    %896 = vmatpush1.bf16.msra.mxu0 %v871
    %897 = vmatprep.subr.bf16.mxu0 0
    %898 = vmatpush1.bf16.msra.mxu0 %v870
    %899 = vmatprep.subr.bf16.mxu0 0
    %900 = vmatpush1.bf16.msra.mxu0 %v869
    %901 = vmatprep.subr.bf16.mxu0 0
    %902 = vmatpush2.bf16.msra.mxu0 0
    %903 = vmatprep.subr.bf16.mxu0 0
    %904 = vmatpush2.bf16.msra.mxu0 0
    %905 = vmatprep.subr.bf16.mxu0 0
    %906 = vmatpush2.bf16.msra.mxu0 0
    %907 = vmatprep.subr.bf16.mxu0 0
    %908 = vmatpush2.bf16.msra.mxu0 0
    %909 = vmatprep.subr.bf16.mxu0 0
    %910 = vmatpush2.bf16.msra.mxu0 0
    %911 = vmatprep.subr.bf16.mxu0 0
    %912 = vmatpush2.bf16.msra.mxu0 0
    %913 = vmatprep.subr.bf16.mxu0 0
    %914 = vmatpush2.bf16.msra.mxu0 0
    %915 = vmatprep.subr.bf16.mxu0 0
    %916 = vmatpush2.bf16.msra.mxu0 0
    %917 = vmatprep.mubr.bf16.mxu0 0
    %918 = vmatmul.mubr.bf16.gmra.mxu0 %v836
    %v919 = vpop.f32.mrf.mxu0
    %v920 = vadd.f32 0.0, %v919
    %v921 = vpop.f32.mrf.mxu0
    %v922 = vpop.f32.mrf.mxu0
    %v923 = vadd.f32 0.0, %v922
    %v924 = vpop.f32.mrf.mxu0
    %925 = vdwg.mxu0
    %926 = vmatprep.subr.bf16.mxu0 0
    %927 = vmatpush1.bf16.msra.mxu0 %v784
    %928 = vmatprep.subr.bf16.mxu0 0
    %929 = vmatpush1.bf16.msra.mxu0 %v783
    %930 = vmatprep.subr.bf16.mxu0 0
    %931 = vmatpush1.bf16.msra.mxu0 %v782
    %932 = vmatprep.subr.bf16.mxu0 0
    %933 = vmatpush1.bf16.msra.mxu0 %v781
    %934 = vmatprep.subr.bf16.mxu0 0
    %935 = vmatpush1.bf16.msra.mxu0 %v780
    %936 = vmatprep.subr.bf16.mxu0 0
    %937 = vmatpush1.bf16.msra.mxu0 %v779
    %938 = vmatprep.subr.bf16.mxu0 0
    %939 = vmatpush1.bf16.msra.mxu0 %v778
    %940 = vmatprep.subr.bf16.mxu0 0
    %941 = vmatpush1.bf16.msra.mxu0 %v777
    %942 = vmatprep.subr.bf16.mxu0 0
    %943 = vmatpush2.bf16.msra.mxu0 0
    %944 = vmatprep.subr.bf16.mxu0 0
    %945 = vmatpush2.bf16.msra.mxu0 0
    %946 = vmatprep.subr.bf16.mxu0 0
    %947 = vmatpush2.bf16.msra.mxu0 0
    %948 = vmatprep.subr.bf16.mxu0 0
    %949 = vmatpush2.bf16.msra.mxu0 0
    %950 = vmatprep.subr.bf16.mxu0 0
    %951 = vmatpush2.bf16.msra.mxu0 0
    %952 = vmatprep.subr.bf16.mxu0 0
    %953 = vmatpush2.bf16.msra.mxu0 0
    %954 = vmatprep.subr.bf16.mxu0 0
    %955 = vmatpush2.bf16.msra.mxu0 0
    %956 = vmatprep.subr.bf16.mxu0 0
    %957 = vmatpush2.bf16.msra.mxu0 0
    %958 = vmatprep.mubr.bf16.mxu0 0
    %959 = vmatmul.mubr.bf16.gmra.mxu0 %v416
    %v960 = vpop.f32.mrf.mxu0
    %v961 = vadd.f32 %v920, %v960
    %v962 = vpop.f32.mrf.mxu0
    %v963 = vpop.f32.mrf.mxu0
    %v964 = vadd.f32 %v923, %v963
    %v965 = vpop.f32.mrf.mxu0
    %966 = vdwg.mxu0
    %v967 = vadd.f32 %v961, %v743
    %v968 = vadd.f32 %v964, %v743
    %v969 = vtanh.pop %v967
    %v970 = vtanh.pop %v968
    %v971 = vpack.c.bf16 %v970, %v969
    %972 = vmatprep.subr.bf16.mxu0 0
    %973 = vmatpush1.bf16.msra.mxu0 %v876
    %974 = vmatprep.subr.bf16.mxu0 0
    %975 = vmatpush1.bf16.msra.mxu0 %v875
    %976 = vmatprep.subr.bf16.mxu0 0
    %977 = vmatpush1.bf16.msra.mxu0 %v874
    %978 = vmatprep.subr.bf16.mxu0 0
    %979 = vmatpush1.bf16.msra.mxu0 %v873
    %980 = vmatprep.subr.bf16.mxu0 0
    %981 = vmatpush1.bf16.msra.mxu0 %v872
    %982 = vmatprep.subr.bf16.mxu0 0
    %983 = vmatpush1.bf16.msra.mxu0 %v871
    %984 = vmatprep.subr.bf16.mxu0 0
    %985 = vmatpush1.bf16.msra.mxu0 %v870
    %986 = vmatprep.subr.bf16.mxu0 0
    %987 = vmatpush1.bf16.msra.mxu0 %v869
    %988 = vmatprep.subr.bf16.mxu0 0
    %989 = vmatpush2.bf16.msra.mxu0 0
    %990 = vmatprep.subr.bf16.mxu0 0
    %991 = vmatpush2.bf16.msra.mxu0 0
    %992 = vmatprep.subr.bf16.mxu0 0
    %993 = vmatpush2.bf16.msra.mxu0 0
    %994 = vmatprep.subr.bf16.mxu0 0
    %995 = vmatpush2.bf16.msra.mxu0 0
    %996 = vmatprep.subr.bf16.mxu0 0
    %997 = vmatpush2.bf16.msra.mxu0 0
    %998 = vmatprep.subr.bf16.mxu0 0
    %999 = vmatpush2.bf16.msra.mxu0 0
    %1000 = vmatprep.subr.bf16.mxu0 0
    %1001 = vmatpush2.bf16.msra.mxu0 0
    %1002 = vmatprep.subr.bf16.mxu0 0
    %1003 = vmatpush2.bf16.msra.mxu0 0
    %1004 = vmatprep.mubr.bf16.mxu0 0
    %1005 = vmatmul.mubr.bf16.gmra.mxu0 %v971
    %v1006 = vpop.f32.mrf.mxu0
    %v1007 = vadd.f32 0.0, %v1006
    %v1008 = vpop.f32.mrf.mxu0
    %v1009 = vpop.f32.mrf.mxu0
    %v1010 = vadd.f32 0.0, %v1009
    %v1011 = vpop.f32.mrf.mxu0
    %1012 = vdwg.mxu0
    %1013 = vmatprep.subr.bf16.mxu0 0
    %1014 = vmatpush1.bf16.msra.mxu0 %v784
    %1015 = vmatprep.subr.bf16.mxu0 0
    %1016 = vmatpush1.bf16.msra.mxu0 %v783
    %1017 = vmatprep.subr.bf16.mxu0 0
    %1018 = vmatpush1.bf16.msra.mxu0 %v782
    %1019 = vmatprep.subr.bf16.mxu0 0
    %1020 = vmatpush1.bf16.msra.mxu0 %v781
    %1021 = vmatprep.subr.bf16.mxu0 0
    %1022 = vmatpush1.bf16.msra.mxu0 %v780
    %1023 = vmatprep.subr.bf16.mxu0 0
    %1024 = vmatpush1.bf16.msra.mxu0 %v779
    %1025 = vmatprep.subr.bf16.mxu0 0
    %1026 = vmatpush1.bf16.msra.mxu0 %v778
    %1027 = vmatprep.subr.bf16.mxu0 0
    %1028 = vmatpush1.bf16.msra.mxu0 %v777
    %1029 = vmatprep.subr.bf16.mxu0 0
    %1030 = vmatpush2.bf16.msra.mxu0 0
    %1031 = vmatprep.subr.bf16.mxu0 0
    %1032 = vmatpush2.bf16.msra.mxu0 0
    %1033 = vmatprep.subr.bf16.mxu0 0
    %1034 = vmatpush2.bf16.msra.mxu0 0
    %1035 = vmatprep.subr.bf16.mxu0 0
    %1036 = vmatpush2.bf16.msra.mxu0 0
    %1037 = vmatprep.subr.bf16.mxu0 0
    %1038 = vmatpush2.bf16.msra.mxu0 0
    %1039 = vmatprep.subr.bf16.mxu0 0
    %1040 = vmatpush2.bf16.msra.mxu0 0
    %1041 = vmatprep.subr.bf16.mxu0 0
    %1042 = vmatpush2.bf16.msra.mxu0 0
    %1043 = vmatprep.subr.bf16.mxu0 0
    %1044 = vmatpush2.bf16.msra.mxu0 0
    %1045 = vmatprep.mubr.bf16.mxu0 0
    %1046 = vmatmul.mubr.bf16.gmra.mxu0 %v464
    %v1047 = vpop.f32.mrf.mxu0
    %v1048 = vadd.f32 %v1007, %v1047
    %v1049 = vpop.f32.mrf.mxu0
    %v1050 = vpop.f32.mrf.mxu0
    %v1051 = vadd.f32 %v1010, %v1050
    %v1052 = vpop.f32.mrf.mxu0
    %1053 = vdwg.mxu0
    %v1054 = vadd.f32 %v1048, %v743
    %v1055 = vadd.f32 %v1051, %v743
    %v1056 = vtanh.pop %v1054
    %v1057 = vtanh.pop %v1055
    %v1058 = vpack.c.bf16 %v1057, %v1056
    %1059 = vmatprep.subr.bf16.mxu0 0
    %1060 = vmatpush1.bf16.msra.mxu0 %v876
    %1061 = vmatprep.subr.bf16.mxu0 0
    %1062 = vmatpush1.bf16.msra.mxu0 %v875
    %1063 = vmatprep.subr.bf16.mxu0 0
    %1064 = vmatpush1.bf16.msra.mxu0 %v874
    %1065 = vmatprep.subr.bf16.mxu0 0
    %1066 = vmatpush1.bf16.msra.mxu0 %v873
    %1067 = vmatprep.subr.bf16.mxu0 0
    %1068 = vmatpush1.bf16.msra.mxu0 %v872
    %1069 = vmatprep.subr.bf16.mxu0 0
    %1070 = vmatpush1.bf16.msra.mxu0 %v871
    %1071 = vmatprep.subr.bf16.mxu0 0
    %1072 = vmatpush1.bf16.msra.mxu0 %v870
    %1073 = vmatprep.subr.bf16.mxu0 0
    %1074 = vmatpush1.bf16.msra.mxu0 %v869
    %1075 = vmatprep.subr.bf16.mxu0 0
    %1076 = vmatpush2.bf16.msra.mxu0 0
    %1077 = vmatprep.subr.bf16.mxu0 0
    %1078 = vmatpush2.bf16.msra.mxu0 0
    %1079 = vmatprep.subr.bf16.mxu0 0
    %1080 = vmatpush2.bf16.msra.mxu0 0
    %1081 = vmatprep.subr.bf16.mxu0 0
    %1082 = vmatpush2.bf16.msra.mxu0 0
    %1083 = vmatprep.subr.bf16.mxu0 0
    %1084 = vmatpush2.bf16.msra.mxu0 0
    %1085 = vmatprep.subr.bf16.mxu0 0
    %1086 = vmatpush2.bf16.msra.mxu0 0
    %1087 = vmatprep.subr.bf16.mxu0 0
    %1088 = vmatpush2.bf16.msra.mxu0 0
    %1089 = vmatprep.subr.bf16.mxu0 0
    %1090 = vmatpush2.bf16.msra.mxu0 0
    %1091 = vmatprep.mubr.bf16.mxu0 0
    %1092 = vmatmul.mubr.bf16.gmra.mxu0 %v1058
    %v1093 = vpop.f32.mrf.mxu0
    %v1094 = vadd.f32 0.0, %v1093
    %v1095 = vpop.f32.mrf.mxu0
    %v1096 = vpop.f32.mrf.mxu0
    %v1097 = vadd.f32 0.0, %v1096
    %v1098 = vpop.f32.mrf.mxu0
    %1099 = vdwg.mxu0
    %1100 = vmatprep.subr.bf16.mxu0 0
    %1101 = vmatpush1.bf16.msra.mxu0 %v784
    %1102 = vmatprep.subr.bf16.mxu0 0
    %1103 = vmatpush1.bf16.msra.mxu0 %v783
    %1104 = vmatprep.subr.bf16.mxu0 0
    %1105 = vmatpush1.bf16.msra.mxu0 %v782
    %1106 = vmatprep.subr.bf16.mxu0 0
    %1107 = vmatpush1.bf16.msra.mxu0 %v781
    %1108 = vmatprep.subr.bf16.mxu0 0
    %1109 = vmatpush1.bf16.msra.mxu0 %v780
    %1110 = vmatprep.subr.bf16.mxu0 0
    %1111 = vmatpush1.bf16.msra.mxu0 %v779
    %1112 = vmatprep.subr.bf16.mxu0 0
    %1113 = vmatpush1.bf16.msra.mxu0 %v778
    %1114 = vmatprep.subr.bf16.mxu0 0
    %1115 = vmatpush1.bf16.msra.mxu0 %v777
    %1116 = vmatprep.subr.bf16.mxu0 0
    %1117 = vmatpush2.bf16.msra.mxu0 0
    %1118 = vmatprep.subr.bf16.mxu0 0
    %1119 = vmatpush2.bf16.msra.mxu0 0
    %1120 = vmatprep.subr.bf16.mxu0 0
    %1121 = vmatpush2.bf16.msra.mxu0 0
    %1122 = vmatprep.subr.bf16.mxu0 0
    %1123 = vmatpush2.bf16.msra.mxu0 0
    %1124 = vmatprep.subr.bf16.mxu0 0
    %1125 = vmatpush2.bf16.msra.mxu0 0
    %1126 = vmatprep.subr.bf16.mxu0 0
    %1127 = vmatpush2.bf16.msra.mxu0 0
    %1128 = vmatprep.subr.bf16.mxu0 0
    %1129 = vmatpush2.bf16.msra.mxu0 0
    %1130 = vmatprep.subr.bf16.mxu0 0
    %1131 = vmatpush2.bf16.msra.mxu0 0
    %1132 = vmatprep.mubr.bf16.mxu0 0
    %1133 = vmatmul.mubr.bf16.gmra.mxu0 %v512
    %v1134 = vpop.f32.mrf.mxu0
    %v1135 = vadd.f32 %v1094, %v1134
    %v1136 = vpop.f32.mrf.mxu0
    %v1137 = vpop.f32.mrf.mxu0
    %v1138 = vadd.f32 %v1097, %v1137
    %v1139 = vpop.f32.mrf.mxu0
    %1140 = vdwg.mxu0
    %v1141 = vadd.f32 %v1135, %v743
    %v1142 = vadd.f32 %v1138, %v743
    %v1143 = vtanh.pop %v1141
    %v1144 = vtanh.pop %v1142
    %v1145 = vpack.c.bf16 %v1144, %v1143
    %1146 = vmatprep.subr.bf16.mxu0 0
    %1147 = vmatpush1.bf16.msra.mxu0 %v876
    %1148 = vmatprep.subr.bf16.mxu0 0
    %1149 = vmatpush1.bf16.msra.mxu0 %v875
    %1150 = vmatprep.subr.bf16.mxu0 0
    %1151 = vmatpush1.bf16.msra.mxu0 %v874
    %1152 = vmatprep.subr.bf16.mxu0 0
    %1153 = vmatpush1.bf16.msra.mxu0 %v873
    %1154 = vmatprep.subr.bf16.mxu0 0
    %1155 = vmatpush1.bf16.msra.mxu0 %v872
    %1156 = vmatprep.subr.bf16.mxu0 0
    %1157 = vmatpush1.bf16.msra.mxu0 %v871
    %1158 = vmatprep.subr.bf16.mxu0 0
    %1159 = vmatpush1.bf16.msra.mxu0 %v870
    %1160 = vmatprep.subr.bf16.mxu0 0
    %1161 = vmatpush1.bf16.msra.mxu0 %v869
    %1162 = vmatprep.subr.bf16.mxu0 0
    %1163 = vmatpush2.bf16.msra.mxu0 0
    %1164 = vmatprep.subr.bf16.mxu0 0
    %1165 = vmatpush2.bf16.msra.mxu0 0
    %1166 = vmatprep.subr.bf16.mxu0 0
    %1167 = vmatpush2.bf16.msra.mxu0 0
    %1168 = vmatprep.subr.bf16.mxu0 0
    %1169 = vmatpush2.bf16.msra.mxu0 0
    %1170 = vmatprep.subr.bf16.mxu0 0
    %1171 = vmatpush2.bf16.msra.mxu0 0
    %1172 = vmatprep.subr.bf16.mxu0 0
    %1173 = vmatpush2.bf16.msra.mxu0 0
    %1174 = vmatprep.subr.bf16.mxu0 0
    %1175 = vmatpush2.bf16.msra.mxu0 0
    %1176 = vmatprep.subr.bf16.mxu0 0
    %1177 = vmatpush2.bf16.msra.mxu0 0
    %1178 = vmatprep.mubr.bf16.mxu0 0
    %1179 = vmatmul.mubr.bf16.gmra.mxu0 %v1145
    %v1180 = vpop.f32.mrf.mxu0
    %v1181 = vadd.f32 0.0, %v1180
    %v1182 = vpop.f32.mrf.mxu0
    %v1183 = vpop.f32.mrf.mxu0
    %v1184 = vadd.f32 0.0, %v1183
    %v1185 = vpop.f32.mrf.mxu0
    %1186 = vdwg.mxu0
    %1187 = vmatprep.subr.bf16.mxu0 0
    %1188 = vmatpush1.bf16.msra.mxu0 %v784
    %1189 = vmatprep.subr.bf16.mxu0 0
    %1190 = vmatpush1.bf16.msra.mxu0 %v783
    %1191 = vmatprep.subr.bf16.mxu0 0
    %1192 = vmatpush1.bf16.msra.mxu0 %v782
    %1193 = vmatprep.subr.bf16.mxu0 0
    %1194 = vmatpush1.bf16.msra.mxu0 %v781
    %1195 = vmatprep.subr.bf16.mxu0 0
    %1196 = vmatpush1.bf16.msra.mxu0 %v780
    %1197 = vmatprep.subr.bf16.mxu0 0
    %1198 = vmatpush1.bf16.msra.mxu0 %v779
    %1199 = vmatprep.subr.bf16.mxu0 0
    %1200 = vmatpush1.bf16.msra.mxu0 %v778
    %1201 = vmatprep.subr.bf16.mxu0 0
    %1202 = vmatpush1.bf16.msra.mxu0 %v777
    %1203 = vmatprep.subr.bf16.mxu0 0
    %1204 = vmatpush2.bf16.msra.mxu0 0
    %1205 = vmatprep.subr.bf16.mxu0 0
    %1206 = vmatpush2.bf16.msra.mxu0 0
    %1207 = vmatprep.subr.bf16.mxu0 0
    %1208 = vmatpush2.bf16.msra.mxu0 0
    %1209 = vmatprep.subr.bf16.mxu0 0
    %1210 = vmatpush2.bf16.msra.mxu0 0
    %1211 = vmatprep.subr.bf16.mxu0 0
    %1212 = vmatpush2.bf16.msra.mxu0 0
    %1213 = vmatprep.subr.bf16.mxu0 0
    %1214 = vmatpush2.bf16.msra.mxu0 0
    %1215 = vmatprep.subr.bf16.mxu0 0
    %1216 = vmatpush2.bf16.msra.mxu0 0
    %1217 = vmatprep.subr.bf16.mxu0 0
    %1218 = vmatpush2.bf16.msra.mxu0 0
    %1219 = vmatprep.mubr.bf16.mxu0 0
    %1220 = vmatmul.mubr.bf16.gmra.mxu0 %v560
    %v1221 = vpop.f32.mrf.mxu0
    %v1222 = vadd.f32 %v1181, %v1221
    %v1223 = vpop.f32.mrf.mxu0
    %v1224 = vpop.f32.mrf.mxu0
    %v1225 = vadd.f32 %v1184, %v1224
    %v1226 = vpop.f32.mrf.mxu0
    %1227 = vdwg.mxu0
    %v1228 = vadd.f32 %v1222, %v743
    %v1229 = vadd.f32 %v1225, %v743
    %v1230 = vtanh.pop %v1228
    %v1231 = vtanh.pop %v1229
    %v1232 = vpack.c.bf16 %v1231, %v1230
    %1233 = vmatprep.subr.bf16.mxu0 0
    %1234 = vmatpush1.bf16.msra.mxu0 %v876
    %1235 = vmatprep.subr.bf16.mxu0 0
    %1236 = vmatpush1.bf16.msra.mxu0 %v875
    %1237 = vmatprep.subr.bf16.mxu0 0
    %1238 = vmatpush1.bf16.msra.mxu0 %v874
    %1239 = vmatprep.subr.bf16.mxu0 0
    %1240 = vmatpush1.bf16.msra.mxu0 %v873
    %1241 = vmatprep.subr.bf16.mxu0 0
    %1242 = vmatpush1.bf16.msra.mxu0 %v872
    %1243 = vmatprep.subr.bf16.mxu0 0
    %1244 = vmatpush1.bf16.msra.mxu0 %v871
    %1245 = vmatprep.subr.bf16.mxu0 0
    %1246 = vmatpush1.bf16.msra.mxu0 %v870
    %1247 = vmatprep.subr.bf16.mxu0 0
    %1248 = vmatpush1.bf16.msra.mxu0 %v869
    %1249 = vmatprep.subr.bf16.mxu0 0
    %1250 = vmatpush2.bf16.msra.mxu0 0
    %1251 = vmatprep.subr.bf16.mxu0 0
    %1252 = vmatpush2.bf16.msra.mxu0 0
    %1253 = vmatprep.subr.bf16.mxu0 0
    %1254 = vmatpush2.bf16.msra.mxu0 0
    %1255 = vmatprep.subr.bf16.mxu0 0
    %1256 = vmatpush2.bf16.msra.mxu0 0
    %1257 = vmatprep.subr.bf16.mxu0 0
    %1258 = vmatpush2.bf16.msra.mxu0 0
    %1259 = vmatprep.subr.bf16.mxu0 0
    %1260 = vmatpush2.bf16.msra.mxu0 0
    %1261 = vmatprep.subr.bf16.mxu0 0
    %1262 = vmatpush2.bf16.msra.mxu0 0
    %1263 = vmatprep.subr.bf16.mxu0 0
    %1264 = vmatpush2.bf16.msra.mxu0 0
    %1265 = vmatprep.mubr.bf16.mxu0 0
    %1266 = vmatmul.mubr.bf16.gmra.mxu0 %v1232
    %v1267 = vpop.f32.mrf.mxu0
    %v1268 = vadd.f32 0.0, %v1267
    %v1269 = vpop.f32.mrf.mxu0
    %v1270 = vpop.f32.mrf.mxu0
    %v1271 = vadd.f32 0.0, %v1270
    %v1272 = vpop.f32.mrf.mxu0
    %1273 = vdwg.mxu0
    %1274 = vmatprep.subr.bf16.mxu0 0
    %1275 = vmatpush1.bf16.msra.mxu0 %v784
    %1276 = vmatprep.subr.bf16.mxu0 0
    %1277 = vmatpush1.bf16.msra.mxu0 %v783
    %1278 = vmatprep.subr.bf16.mxu0 0
    %1279 = vmatpush1.bf16.msra.mxu0 %v782
    %1280 = vmatprep.subr.bf16.mxu0 0
    %1281 = vmatpush1.bf16.msra.mxu0 %v781
    %1282 = vmatprep.subr.bf16.mxu0 0
    %1283 = vmatpush1.bf16.msra.mxu0 %v780
    %1284 = vmatprep.subr.bf16.mxu0 0
    %1285 = vmatpush1.bf16.msra.mxu0 %v779
    %1286 = vmatprep.subr.bf16.mxu0 0
    %1287 = vmatpush1.bf16.msra.mxu0 %v778
    %1288 = vmatprep.subr.bf16.mxu0 0
    %1289 = vmatpush1.bf16.msra.mxu0 %v777
    %1290 = vmatprep.subr.bf16.mxu0 0
    %1291 = vmatpush2.bf16.msra.mxu0 0
    %1292 = vmatprep.subr.bf16.mxu0 0
    %1293 = vmatpush2.bf16.msra.mxu0 0
    %1294 = vmatprep.subr.bf16.mxu0 0
    %1295 = vmatpush2.bf16.msra.mxu0 0
    %1296 = vmatprep.subr.bf16.mxu0 0
    %1297 = vmatpush2.bf16.msra.mxu0 0
    %1298 = vmatprep.subr.bf16.mxu0 0
    %1299 = vmatpush2.bf16.msra.mxu0 0
    %1300 = vmatprep.subr.bf16.mxu0 0
    %1301 = vmatpush2.bf16.msra.mxu0 0
    %1302 = vmatprep.subr.bf16.mxu0 0
    %1303 = vmatpush2.bf16.msra.mxu0 0
    %1304 = vmatprep.subr.bf16.mxu0 0
    %1305 = vmatpush2.bf16.msra.mxu0 0
    %1306 = vmatprep.mubr.bf16.mxu0 0
    %1307 = vmatmul.mubr.bf16.gmra.mxu0 %v608
    %v1308 = vpop.f32.mrf.mxu0
    %v1309 = vadd.f32 %v1268, %v1308
    %v1310 = vpop.f32.mrf.mxu0
    %v1311 = vpop.f32.mrf.mxu0
    %v1312 = vadd.f32 %v1271, %v1311
    %v1313 = vpop.f32.mrf.mxu0
    %1314 = vdwg.mxu0
    %v1315 = vadd.f32 %v1309, %v743
    %v1316 = vadd.f32 %v1312, %v743
    %v1317 = vtanh.pop %v1315
    %v1318 = vtanh.pop %v1316
    %v1319 = vpack.c.bf16 %v1318, %v1317
    %1320 = vmatprep.subr.bf16.mxu0 0
    %1321 = vmatpush1.bf16.msra.mxu0 %v876
    %1322 = vmatprep.subr.bf16.mxu0 0
    %1323 = vmatpush1.bf16.msra.mxu0 %v875
    %1324 = vmatprep.subr.bf16.mxu0 0
    %1325 = vmatpush1.bf16.msra.mxu0 %v874
    %1326 = vmatprep.subr.bf16.mxu0 0
    %1327 = vmatpush1.bf16.msra.mxu0 %v873
    %1328 = vmatprep.subr.bf16.mxu0 0
    %1329 = vmatpush1.bf16.msra.mxu0 %v872
    %1330 = vmatprep.subr.bf16.mxu0 0
    %1331 = vmatpush1.bf16.msra.mxu0 %v871
    %1332 = vmatprep.subr.bf16.mxu0 0
    %1333 = vmatpush1.bf16.msra.mxu0 %v870
    %1334 = vmatprep.subr.bf16.mxu0 0
    %1335 = vmatpush1.bf16.msra.mxu0 %v869
    %1336 = vmatprep.subr.bf16.mxu0 0
    %1337 = vmatpush2.bf16.msra.mxu0 0
    %1338 = vmatprep.subr.bf16.mxu0 0
    %1339 = vmatpush2.bf16.msra.mxu0 0
    %1340 = vmatprep.subr.bf16.mxu0 0
    %1341 = vmatpush2.bf16.msra.mxu0 0
    %1342 = vmatprep.subr.bf16.mxu0 0
    %1343 = vmatpush2.bf16.msra.mxu0 0
    %1344 = vmatprep.subr.bf16.mxu0 0
    %1345 = vmatpush2.bf16.msra.mxu0 0
    %1346 = vmatprep.subr.bf16.mxu0 0
    %1347 = vmatpush2.bf16.msra.mxu0 0
    %1348 = vmatprep.subr.bf16.mxu0 0
    %1349 = vmatpush2.bf16.msra.mxu0 0
    %1350 = vmatprep.subr.bf16.mxu0 0
    %1351 = vmatpush2.bf16.msra.mxu0 0
    %1352 = vmatprep.mubr.bf16.mxu0 0
    %1353 = vmatmul.mubr.bf16.gmra.mxu0 %v1319
    %v1354 = vpop.f32.mrf.mxu0
    %v1355 = vadd.f32 0.0, %v1354
    %v1356 = vpop.f32.mrf.mxu0
    %v1357 = vpop.f32.mrf.mxu0
    %v1358 = vadd.f32 0.0, %v1357
    %v1359 = vpop.f32.mrf.mxu0
    %1360 = vdwg.mxu0
    %1361 = vmatprep.subr.bf16.mxu0 0
    %1362 = vmatpush1.bf16.msra.mxu0 %v784
    %1363 = vmatprep.subr.bf16.mxu0 0
    %1364 = vmatpush1.bf16.msra.mxu0 %v783
    %1365 = vmatprep.subr.bf16.mxu0 0
    %1366 = vmatpush1.bf16.msra.mxu0 %v782
    %1367 = vmatprep.subr.bf16.mxu0 0
    %1368 = vmatpush1.bf16.msra.mxu0 %v781
    %1369 = vmatprep.subr.bf16.mxu0 0
    %1370 = vmatpush1.bf16.msra.mxu0 %v780
    %1371 = vmatprep.subr.bf16.mxu0 0
    %1372 = vmatpush1.bf16.msra.mxu0 %v779
    %1373 = vmatprep.subr.bf16.mxu0 0
    %1374 = vmatpush1.bf16.msra.mxu0 %v778
    %1375 = vmatprep.subr.bf16.mxu0 0
    %1376 = vmatpush1.bf16.msra.mxu0 %v777
    %1377 = vmatprep.subr.bf16.mxu0 0
    %1378 = vmatpush2.bf16.msra.mxu0 0
    %1379 = vmatprep.subr.bf16.mxu0 0
    %1380 = vmatpush2.bf16.msra.mxu0 0
    %1381 = vmatprep.subr.bf16.mxu0 0
    %1382 = vmatpush2.bf16.msra.mxu0 0
    %1383 = vmatprep.subr.bf16.mxu0 0
    %1384 = vmatpush2.bf16.msra.mxu0 0
    %1385 = vmatprep.subr.bf16.mxu0 0
    %1386 = vmatpush2.bf16.msra.mxu0 0
    %1387 = vmatprep.subr.bf16.mxu0 0
    %1388 = vmatpush2.bf16.msra.mxu0 0
    %1389 = vmatprep.subr.bf16.mxu0 0
    %1390 = vmatpush2.bf16.msra.mxu0 0
    %1391 = vmatprep.subr.bf16.mxu0 0
    %1392 = vmatpush2.bf16.msra.mxu0 0
    %1393 = vmatprep.mubr.bf16.mxu0 0
    %1394 = vmatmul.mubr.bf16.gmra.mxu0 %v656
    %v1395 = vpop.f32.mrf.mxu0
    %v1396 = vadd.f32 %v1355, %v1395
    %v1397 = vpop.f32.mrf.mxu0
    %v1398 = vpop.f32.mrf.mxu0
    %v1399 = vadd.f32 %v1358, %v1398
    %v1400 = vpop.f32.mrf.mxu0
    %1401 = vdwg.mxu0
    %v1402 = vadd.f32 %v1396, %v743
    %v1403 = vadd.f32 %v1399, %v743
    %v1404 = vtanh.pop %v1402
    %v1405 = vtanh.pop %v1403
    %v1406 = vpack.c.bf16 %v703, %v702
    %v1407 = vpack.c.bf16 %v1405, %v1404
    %1408 = vmatprep.subr.bf16.mxu0 0
    %1409 = vmatpush1.bf16.msra.mxu0 %v876
    %1410 = vmatprep.subr.bf16.mxu0 0
    %1411 = vmatpush1.bf16.msra.mxu0 %v875
    %1412 = vmatprep.subr.bf16.mxu0 0
    %1413 = vmatpush1.bf16.msra.mxu0 %v874
    %1414 = vmatprep.subr.bf16.mxu0 0
    %1415 = vmatpush1.bf16.msra.mxu0 %v873
    %1416 = vmatprep.subr.bf16.mxu0 0
    %1417 = vmatpush1.bf16.msra.mxu0 %v872
    %1418 = vmatprep.subr.bf16.mxu0 0
    %1419 = vmatpush1.bf16.msra.mxu0 %v871
    %1420 = vmatprep.subr.bf16.mxu0 0
    %1421 = vmatpush1.bf16.msra.mxu0 %v870
    %1422 = vmatprep.subr.bf16.mxu0 0
    %1423 = vmatpush1.bf16.msra.mxu0 %v869
    %1424 = vmatprep.subr.bf16.mxu0 0
    %1425 = vmatpush2.bf16.msra.mxu0 0
    %1426 = vmatprep.subr.bf16.mxu0 0
    %1427 = vmatpush2.bf16.msra.mxu0 0
    %1428 = vmatprep.subr.bf16.mxu0 0
    %1429 = vmatpush2.bf16.msra.mxu0 0
    %1430 = vmatprep.subr.bf16.mxu0 0
    %1431 = vmatpush2.bf16.msra.mxu0 0
    %1432 = vmatprep.subr.bf16.mxu0 0
    %1433 = vmatpush2.bf16.msra.mxu0 0
    %1434 = vmatprep.subr.bf16.mxu0 0
    %1435 = vmatpush2.bf16.msra.mxu0 0
    %1436 = vmatprep.subr.bf16.mxu0 0
    %1437 = vmatpush2.bf16.msra.mxu0 0
    %1438 = vmatprep.subr.bf16.mxu0 0
    %1439 = vmatpush2.bf16.msra.mxu0 0
    %1440 = vmatprep.mubr.bf16.mxu0 0
    %1441 = vmatmul.mubr.bf16.gmra.mxu0 %v1407
    %v1442 = vpop.f32.mrf.mxu0
    %v1443 = vadd.f32 0.0, %v1442
    %v1444 = vpop.f32.mrf.mxu0
    %v1445 = vpop.f32.mrf.mxu0
    %v1446 = vadd.f32 0.0, %v1445
    %v1447 = vpop.f32.mrf.mxu0
    %1448 = vdwg.mxu0
    %1449 = vmatprep.subr.bf16.mxu0 0
    %1450 = vmatpush1.bf16.msra.mxu0 %v784
    %1451 = vmatprep.subr.bf16.mxu0 0
    %1452 = vmatpush1.bf16.msra.mxu0 %v783
    %1453 = vmatprep.subr.bf16.mxu0 0
    %1454 = vmatpush1.bf16.msra.mxu0 %v782
    %1455 = vmatprep.subr.bf16.mxu0 0
    %1456 = vmatpush1.bf16.msra.mxu0 %v781
    %1457 = vmatprep.subr.bf16.mxu0 0
    %1458 = vmatpush1.bf16.msra.mxu0 %v780
    %1459 = vmatprep.subr.bf16.mxu0 0
    %1460 = vmatpush1.bf16.msra.mxu0 %v779
    %1461 = vmatprep.subr.bf16.mxu0 0
    %1462 = vmatpush1.bf16.msra.mxu0 %v778
    %1463 = vmatprep.subr.bf16.mxu0 0
    %1464 = vmatpush1.bf16.msra.mxu0 %v777
    %1465 = vmatprep.subr.bf16.mxu0 0
    %1466 = vmatpush2.bf16.msra.mxu0 0
    %1467 = vmatprep.subr.bf16.mxu0 0
    %1468 = vmatpush2.bf16.msra.mxu0 0
    %1469 = vmatprep.subr.bf16.mxu0 0
    %1470 = vmatpush2.bf16.msra.mxu0 0
    %1471 = vmatprep.subr.bf16.mxu0 0
    %1472 = vmatpush2.bf16.msra.mxu0 0
    %1473 = vmatprep.subr.bf16.mxu0 0
    %1474 = vmatpush2.bf16.msra.mxu0 0
    %1475 = vmatprep.subr.bf16.mxu0 0
    %1476 = vmatpush2.bf16.msra.mxu0 0
    %1477 = vmatprep.subr.bf16.mxu0 0
    %1478 = vmatpush2.bf16.msra.mxu0 0
    %1479 = vmatprep.subr.bf16.mxu0 0
    %1480 = vmatpush2.bf16.msra.mxu0 0
    %1481 = vmatprep.mubr.bf16.mxu0 0
    %1482 = vmatmul.mubr.bf16.gmra.mxu0 %v1406
    %v1483 = vpop.f32.mrf.mxu0
    %v1484 = vadd.f32 %v1443, %v1483
    %v1485 = vpop.f32.mrf.mxu0
    %v1486 = vpop.f32.mrf.mxu0
    %v1487 = vadd.f32 %v1446, %v1486
    %v1488 = vpop.f32.mrf.mxu0
    %1489 = vdwg.mxu0
    %v1490 = vadd.f32 %v1484, %v743
    %v1491 = vadd.f32 %v1487, %v743
    %v1492 = vtanh.pop %v1490
    %v1493 = vtanh.pop %v1491
    %s1494 = scalar_lea.vmem [#allocation4], 64
    %v1495 = vld [vmem:[%s1494] sm:$0xf]
    %v1496 = vld [vmem:[%s1494 + $0x4] sm:$0xf]
    %v1497 = vld [vmem:[%s1494 + $0x8] sm:$0xf]
    %v1498 = vld [vmem:[%s1494 + $0xc] sm:$0xf]
    %v1499 = vld [vmem:[%s1494 + $0x10] sm:$0xf]
    %v1500 = vld [vmem:[%s1494 + $0x14] sm:$0xf]
    %v1501 = vld [vmem:[%s1494 + $0x18] sm:$0xf]
    %v1502 = vld [vmem:[%s1494 + $0x1c] sm:$0xf]
    %v1503 = vld [vmem:[%s1494 + $0x20] sm:$0xf]
    %v1504 = vld [vmem:[%s1494 + $0x24] sm:$0xf]
    %v1505 = vld [vmem:[%s1494 + $0x28] sm:$0xf]
    %v1506 = vld [vmem:[%s1494 + $0x2c] sm:$0xf]
    %v1507 = vld [vmem:[%s1494 + $0x30] sm:$0xf]
    %v1508 = vld [vmem:[%s1494 + $0x34] sm:$0xf]
    %v1509 = vld [vmem:[%s1494 + $0x38] sm:$0xf]
    %v1510 = vld [vmem:[%s1494 + $0x3c] sm:$0xf]
    %s1511 = scalar_lea.vmem %s3, 128
    %v1512 = vld [vmem:[%s1511] sm:$0xf]
    %v1513 = vld [vmem:[%s1511 + $0x4] sm:$0xf]
    %v1514 = vld [vmem:[%s1511 + $0x8] sm:$0xf]
    %v1515 = vld [vmem:[%s1511 + $0xc] sm:$0xf]
    %v1516 = vld [vmem:[%s1511 + $0x10] sm:$0xf]
    %v1517 = vld [vmem:[%s1511 + $0x14] sm:$0xf]
    %v1518 = vld [vmem:[%s1511 + $0x18] sm:$0xf]
    %v1519 = vld [vmem:[%s1511 + $0x1c] sm:$0xf]
    %v1520 = vld [vmem:[%s1511 + $0x20] sm:$0xf]
    %v1521 = vld [vmem:[%s1511 + $0x24] sm:$0xf]
    %v1522 = vld [vmem:[%s1511 + $0x28] sm:$0xf]
    %v1523 = vld [vmem:[%s1511 + $0x2c] sm:$0xf]
    %v1524 = vld [vmem:[%s1511 + $0x30] sm:$0xf]
    %v1525 = vld [vmem:[%s1511 + $0x34] sm:$0xf]
    %v1526 = vld [vmem:[%s1511 + $0x38] sm:$0xf]
    %v1527 = vld [vmem:[%s1511 + $0x3c] sm:$0xf]
    %s1528 = scalar_lea.vmem %s4, 2
    %v1529 = vld [vmem:[%s1528] sm:$0x1]
    %v1531 = vlaneseq
    %v1532 = vshrl.u32 %v1531, 7
    %v1533 = vsub.s32 0, %v1532
    %v1534 = vrot.slane %v1529, %v1533
    %v1552 = vunpack.c.l.b16 %v1495
    %v1553 = vunpack.c.l.b16 %v1496
    %v1554 = vunpack.c.l.b16 %v1497
    %v1555 = vunpack.c.l.b16 %v1498
    %v1556 = vunpack.c.l.b16 %v1499
    %v1557 = vunpack.c.l.b16 %v1500
    %v1558 = vunpack.c.l.b16 %v1501
    %v1559 = vunpack.c.l.b16 %v1502
    %v1560 = vunpack.c.l.b16 %v1503
    %v1561 = vunpack.c.l.b16 %v1504
    %v1562 = vunpack.c.l.b16 %v1505
    %v1563 = vunpack.c.l.b16 %v1506
    %v1564 = vunpack.c.l.b16 %v1507
    %v1565 = vunpack.c.l.b16 %v1508
    %v1566 = vunpack.c.l.b16 %v1509
    %v1567 = vunpack.c.l.b16 %v1510
    %v1568 = vpack.c.b16 %v1553, %v1552
    %v1569 = vpack.c.b16 %v1555, %v1554
    %v1570 = vpack.c.b16 %v1557, %v1556
    %v1571 = vpack.c.b16 %v1559, %v1558
    %v1572 = vpack.c.b16 %v1561, %v1560
    %v1573 = vpack.c.b16 %v1563, %v1562
    %v1574 = vpack.c.b16 %v1565, %v1564
    %v1575 = vpack.c.b16 %v1567, %v1566
    %1584 = vmatprep.subr.bf16.mxu0 0
    %1585 = vmatpush1.bf16.msra.mxu0 %v1575
    %1586 = vmatprep.subr.bf16.mxu0 0
    %1587 = vmatpush1.bf16.msra.mxu0 %v1574
    %1588 = vmatprep.subr.bf16.mxu0 0
    %1589 = vmatpush1.bf16.msra.mxu0 %v1573
    %1590 = vmatprep.subr.bf16.mxu0 0
    %1591 = vmatpush1.bf16.msra.mxu0 %v1572
    %1592 = vmatprep.subr.bf16.mxu0 0
    %1593 = vmatpush1.bf16.msra.mxu0 %v1571
    %1594 = vmatprep.subr.bf16.mxu0 0
    %1595 = vmatpush1.bf16.msra.mxu0 %v1570
    %1596 = vmatprep.subr.bf16.mxu0 0
    %1597 = vmatpush1.bf16.msra.mxu0 %v1569
    %1598 = vmatprep.subr.bf16.mxu0 0
    %1599 = vmatpush1.bf16.msra.mxu0 %v1568
    %1600 = vmatprep.subr.bf16.mxu0 0
    %1601 = vmatpush2.bf16.msra.mxu0 0
    %1602 = vmatprep.subr.bf16.mxu0 0
    %1603 = vmatpush2.bf16.msra.mxu0 0
    %1604 = vmatprep.subr.bf16.mxu0 0
    %1605 = vmatpush2.bf16.msra.mxu0 0
    %1606 = vmatprep.subr.bf16.mxu0 0
    %1607 = vmatpush2.bf16.msra.mxu0 0
    %1608 = vmatprep.subr.bf16.mxu0 0
    %1609 = vmatpush2.bf16.msra.mxu0 0
    %1610 = vmatprep.subr.bf16.mxu0 0
    %1611 = vmatpush2.bf16.msra.mxu0 0
    %1612 = vmatprep.subr.bf16.mxu0 0
    %1613 = vmatpush2.bf16.msra.mxu0 0
    %1614 = vmatprep.subr.bf16.mxu0 0
    %1615 = vmatpush2.bf16.msra.mxu0 0
    %1616 = vmatprep.mubr.bf16.mxu0 0
    %1617 = vmatmul.mubr.bf16.gmra.mxu0 %v836
    %v1618 = vpop.f32.mrf.mxu0
    %v1619 = vadd.f32 %v1534, %v1618
    %v1620 = vpop.f32.mrf.mxu0
    %v1621 = vpop.f32.mrf.mxu0
    %v1622 = vadd.f32 %v1534, %v1621
    %v1623 = vpop.f32.mrf.mxu0
    %1624 = vdwg.mxu0
    %v1625 = vtanh.pop %v1619
    %v1626 = vtanh.pop %v1622
    %v1627 = vpack.c.bf16 %v1626, %v1625
    %v1644 = vunpack.c.l.b16 %v1512
    %v1645 = vunpack.c.l.b16 %v1513
    %v1646 = vunpack.c.l.b16 %v1514
    %v1647 = vunpack.c.l.b16 %v1515
    %v1648 = vunpack.c.l.b16 %v1516
    %v1649 = vunpack.c.l.b16 %v1517
    %v1650 = vunpack.c.l.b16 %v1518
    %v1651 = vunpack.c.l.b16 %v1519
    %v1652 = vunpack.c.l.b16 %v1520
    %v1653 = vunpack.c.l.b16 %v1521
    %v1654 = vunpack.c.l.b16 %v1522
    %v1655 = vunpack.c.l.b16 %v1523
    %v1656 = vunpack.c.l.b16 %v1524
    %v1657 = vunpack.c.l.b16 %v1525
    %v1658 = vunpack.c.l.b16 %v1526
    %v1659 = vunpack.c.l.b16 %v1527
    %v1660 = vpack.c.b16 %v1645, %v1644
    %v1661 = vpack.c.b16 %v1647, %v1646
    %v1662 = vpack.c.b16 %v1649, %v1648
    %v1663 = vpack.c.b16 %v1651, %v1650
    %v1664 = vpack.c.b16 %v1653, %v1652
    %v1665 = vpack.c.b16 %v1655, %v1654
    %v1666 = vpack.c.b16 %v1657, %v1656
    %v1667 = vpack.c.b16 %v1659, %v1658
    %1676 = vmatprep.subr.bf16.mxu0 0
    %1677 = vmatpush1.bf16.msra.mxu0 %v1667
    %1678 = vmatprep.subr.bf16.mxu0 0
    %1679 = vmatpush1.bf16.msra.mxu0 %v1666
    %1680 = vmatprep.subr.bf16.mxu0 0
    %1681 = vmatpush1.bf16.msra.mxu0 %v1665
    %1682 = vmatprep.subr.bf16.mxu0 0
    %1683 = vmatpush1.bf16.msra.mxu0 %v1664
    %1684 = vmatprep.subr.bf16.mxu0 0
    %1685 = vmatpush1.bf16.msra.mxu0 %v1663
    %1686 = vmatprep.subr.bf16.mxu0 0
    %1687 = vmatpush1.bf16.msra.mxu0 %v1662
    %1688 = vmatprep.subr.bf16.mxu0 0
    %1689 = vmatpush1.bf16.msra.mxu0 %v1661
    %1690 = vmatprep.subr.bf16.mxu0 0
    %1691 = vmatpush1.bf16.msra.mxu0 %v1660
    %1692 = vmatprep.subr.bf16.mxu0 0
    %1693 = vmatpush2.bf16.msra.mxu0 0
    %1694 = vmatprep.subr.bf16.mxu0 0
    %1695 = vmatpush2.bf16.msra.mxu0 0
    %1696 = vmatprep.subr.bf16.mxu0 0
    %1697 = vmatpush2.bf16.msra.mxu0 0
    %1698 = vmatprep.subr.bf16.mxu0 0
    %1699 = vmatpush2.bf16.msra.mxu0 0
    %1700 = vmatprep.subr.bf16.mxu0 0
    %1701 = vmatpush2.bf16.msra.mxu0 0
    %1702 = vmatprep.subr.bf16.mxu0 0
    %1703 = vmatpush2.bf16.msra.mxu0 0
    %1704 = vmatprep.subr.bf16.mxu0 0
    %1705 = vmatpush2.bf16.msra.mxu0 0
    %1706 = vmatprep.subr.bf16.mxu0 0
    %1707 = vmatpush2.bf16.msra.mxu0 0
    %1708 = vmatprep.mubr.bf16.mxu0 0
    %1709 = vmatmul.mubr.bf16.gmra.mxu0 %v1627
    %v1710 = vpop.f32.mrf.mxu0
    %v1711 = vadd.f32 0.0, %v1710
    %v1712 = vpop.f32.mrf.mxu0
    %v1713 = vpop.f32.mrf.mxu0
    %v1714 = vadd.f32 0.0, %v1713
    %v1715 = vpop.f32.mrf.mxu0
    %1716 = vdwg.mxu0
    %1717 = vmatprep.subr.bf16.mxu0 0
    %1718 = vmatpush1.bf16.msra.mxu0 %v1575
    %1719 = vmatprep.subr.bf16.mxu0 0
    %1720 = vmatpush1.bf16.msra.mxu0 %v1574
    %1721 = vmatprep.subr.bf16.mxu0 0
    %1722 = vmatpush1.bf16.msra.mxu0 %v1573
    %1723 = vmatprep.subr.bf16.mxu0 0
    %1724 = vmatpush1.bf16.msra.mxu0 %v1572
    %1725 = vmatprep.subr.bf16.mxu0 0
    %1726 = vmatpush1.bf16.msra.mxu0 %v1571
    %1727 = vmatprep.subr.bf16.mxu0 0
    %1728 = vmatpush1.bf16.msra.mxu0 %v1570
    %1729 = vmatprep.subr.bf16.mxu0 0
    %1730 = vmatpush1.bf16.msra.mxu0 %v1569
    %1731 = vmatprep.subr.bf16.mxu0 0
    %1732 = vmatpush1.bf16.msra.mxu0 %v1568
    %1733 = vmatprep.subr.bf16.mxu0 0
    %1734 = vmatpush2.bf16.msra.mxu0 0
    %1735 = vmatprep.subr.bf16.mxu0 0
    %1736 = vmatpush2.bf16.msra.mxu0 0
    %1737 = vmatprep.subr.bf16.mxu0 0
    %1738 = vmatpush2.bf16.msra.mxu0 0
    %1739 = vmatprep.subr.bf16.mxu0 0
    %1740 = vmatpush2.bf16.msra.mxu0 0
    %1741 = vmatprep.subr.bf16.mxu0 0
    %1742 = vmatpush2.bf16.msra.mxu0 0
    %1743 = vmatprep.subr.bf16.mxu0 0
    %1744 = vmatpush2.bf16.msra.mxu0 0
    %1745 = vmatprep.subr.bf16.mxu0 0
    %1746 = vmatpush2.bf16.msra.mxu0 0
    %1747 = vmatprep.subr.bf16.mxu0 0
    %1748 = vmatpush2.bf16.msra.mxu0 0
    %1749 = vmatprep.mubr.bf16.mxu0 0
    %1750 = vmatmul.mubr.bf16.gmra.mxu0 %v971
    %v1751 = vpop.f32.mrf.mxu0
    %v1752 = vadd.f32 %v1711, %v1751
    %v1753 = vpop.f32.mrf.mxu0
    %v1754 = vpop.f32.mrf.mxu0
    %v1755 = vadd.f32 %v1714, %v1754
    %v1756 = vpop.f32.mrf.mxu0
    %1757 = vdwg.mxu0
    %v1758 = vadd.f32 %v1752, %v1534
    %v1759 = vadd.f32 %v1755, %v1534
    %v1760 = vtanh.pop %v1758
    %v1761 = vtanh.pop %v1759
    %v1762 = vpack.c.bf16 %v1761, %v1760
    %1763 = vmatprep.subr.bf16.mxu0 0
    %1764 = vmatpush1.bf16.msra.mxu0 %v1667
    %1765 = vmatprep.subr.bf16.mxu0 0
    %1766 = vmatpush1.bf16.msra.mxu0 %v1666
    %1767 = vmatprep.subr.bf16.mxu0 0
    %1768 = vmatpush1.bf16.msra.mxu0 %v1665
    %1769 = vmatprep.subr.bf16.mxu0 0
    %1770 = vmatpush1.bf16.msra.mxu0 %v1664
    %1771 = vmatprep.subr.bf16.mxu0 0
    %1772 = vmatpush1.bf16.msra.mxu0 %v1663
    %1773 = vmatprep.subr.bf16.mxu0 0
    %1774 = vmatpush1.bf16.msra.mxu0 %v1662
    %1775 = vmatprep.subr.bf16.mxu0 0
    %1776 = vmatpush1.bf16.msra.mxu0 %v1661
    %1777 = vmatprep.subr.bf16.mxu0 0
    %1778 = vmatpush1.bf16.msra.mxu0 %v1660
    %1779 = vmatprep.subr.bf16.mxu0 0
    %1780 = vmatpush2.bf16.msra.mxu0 0
    %1781 = vmatprep.subr.bf16.mxu0 0
    %1782 = vmatpush2.bf16.msra.mxu0 0
    %1783 = vmatprep.subr.bf16.mxu0 0
    %1784 = vmatpush2.bf16.msra.mxu0 0
    %1785 = vmatprep.subr.bf16.mxu0 0
    %1786 = vmatpush2.bf16.msra.mxu0 0
    %1787 = vmatprep.subr.bf16.mxu0 0
    %1788 = vmatpush2.bf16.msra.mxu0 0
    %1789 = vmatprep.subr.bf16.mxu0 0
    %1790 = vmatpush2.bf16.msra.mxu0 0
    %1791 = vmatprep.subr.bf16.mxu0 0
    %1792 = vmatpush2.bf16.msra.mxu0 0
    %1793 = vmatprep.subr.bf16.mxu0 0
    %1794 = vmatpush2.bf16.msra.mxu0 0
    %1795 = vmatprep.mubr.bf16.mxu0 0
    %1796 = vmatmul.mubr.bf16.gmra.mxu0 %v1762
    %v1797 = vpop.f32.mrf.mxu0
    %v1798 = vadd.f32 0.0, %v1797
    %v1799 = vpop.f32.mrf.mxu0
    %v1800 = vpop.f32.mrf.mxu0
    %v1801 = vadd.f32 0.0, %v1800
    %v1802 = vpop.f32.mrf.mxu0
    %1803 = vdwg.mxu0
    %1804 = vmatprep.subr.bf16.mxu0 0
    %1805 = vmatpush1.bf16.msra.mxu0 %v1575
    %1806 = vmatprep.subr.bf16.mxu0 0
    %1807 = vmatpush1.bf16.msra.mxu0 %v1574
    %1808 = vmatprep.subr.bf16.mxu0 0
    %1809 = vmatpush1.bf16.msra.mxu0 %v1573
    %1810 = vmatprep.subr.bf16.mxu0 0
    %1811 = vmatpush1.bf16.msra.mxu0 %v1572
    %1812 = vmatprep.subr.bf16.mxu0 0
    %1813 = vmatpush1.bf16.msra.mxu0 %v1571
    %1814 = vmatprep.subr.bf16.mxu0 0
    %1815 = vmatpush1.bf16.msra.mxu0 %v1570
    %1816 = vmatprep.subr.bf16.mxu0 0
    %1817 = vmatpush1.bf16.msra.mxu0 %v1569
    %1818 = vmatprep.subr.bf16.mxu0 0
    %1819 = vmatpush1.bf16.msra.mxu0 %v1568
    %1820 = vmatprep.subr.bf16.mxu0 0
    %1821 = vmatpush2.bf16.msra.mxu0 0
    %1822 = vmatprep.subr.bf16.mxu0 0
    %1823 = vmatpush2.bf16.msra.mxu0 0
    %1824 = vmatprep.subr.bf16.mxu0 0
    %1825 = vmatpush2.bf16.msra.mxu0 0
    %1826 = vmatprep.subr.bf16.mxu0 0
    %1827 = vmatpush2.bf16.msra.mxu0 0
    %1828 = vmatprep.subr.bf16.mxu0 0
    %1829 = vmatpush2.bf16.msra.mxu0 0
    %1830 = vmatprep.subr.bf16.mxu0 0
    %1831 = vmatpush2.bf16.msra.mxu0 0
    %1832 = vmatprep.subr.bf16.mxu0 0
    %1833 = vmatpush2.bf16.msra.mxu0 0
    %1834 = vmatprep.subr.bf16.mxu0 0
    %1835 = vmatpush2.bf16.msra.mxu0 0
    %1836 = vmatprep.mubr.bf16.mxu0 0
    %1837 = vmatmul.mubr.bf16.gmra.mxu0 %v1058
    %v1838 = vpop.f32.mrf.mxu0
    %v1839 = vadd.f32 %v1798, %v1838
    %v1840 = vpop.f32.mrf.mxu0
    %v1841 = vpop.f32.mrf.mxu0
    %v1842 = vadd.f32 %v1801, %v1841
    %v1843 = vpop.f32.mrf.mxu0
    %1844 = vdwg.mxu0
    %v1845 = vadd.f32 %v1839, %v1534
    %v1846 = vadd.f32 %v1842, %v1534
    %v1847 = vtanh.pop %v1845
    %v1848 = vtanh.pop %v1846
    %v1849 = vpack.c.bf16 %v1848, %v1847
    %1850 = vmatprep.subr.bf16.mxu0 0
    %1851 = vmatpush1.bf16.msra.mxu0 %v1667
    %1852 = vmatprep.subr.bf16.mxu0 0
    %1853 = vmatpush1.bf16.msra.mxu0 %v1666
    %1854 = vmatprep.subr.bf16.mxu0 0
    %1855 = vmatpush1.bf16.msra.mxu0 %v1665
    %1856 = vmatprep.subr.bf16.mxu0 0
    %1857 = vmatpush1.bf16.msra.mxu0 %v1664
    %1858 = vmatprep.subr.bf16.mxu0 0
    %1859 = vmatpush1.bf16.msra.mxu0 %v1663
    %1860 = vmatprep.subr.bf16.mxu0 0
    %1861 = vmatpush1.bf16.msra.mxu0 %v1662
    %1862 = vmatprep.subr.bf16.mxu0 0
    %1863 = vmatpush1.bf16.msra.mxu0 %v1661
    %1864 = vmatprep.subr.bf16.mxu0 0
    %1865 = vmatpush1.bf16.msra.mxu0 %v1660
    %1866 = vmatprep.subr.bf16.mxu0 0
    %1867 = vmatpush2.bf16.msra.mxu0 0
    %1868 = vmatprep.subr.bf16.mxu0 0
    %1869 = vmatpush2.bf16.msra.mxu0 0
    %1870 = vmatprep.subr.bf16.mxu0 0
    %1871 = vmatpush2.bf16.msra.mxu0 0
    %1872 = vmatprep.subr.bf16.mxu0 0
    %1873 = vmatpush2.bf16.msra.mxu0 0
    %1874 = vmatprep.subr.bf16.mxu0 0
    %1875 = vmatpush2.bf16.msra.mxu0 0
    %1876 = vmatprep.subr.bf16.mxu0 0
    %1877 = vmatpush2.bf16.msra.mxu0 0
    %1878 = vmatprep.subr.bf16.mxu0 0
    %1879 = vmatpush2.bf16.msra.mxu0 0
    %1880 = vmatprep.subr.bf16.mxu0 0
    %1881 = vmatpush2.bf16.msra.mxu0 0
    %1882 = vmatprep.mubr.bf16.mxu0 0
    %1883 = vmatmul.mubr.bf16.gmra.mxu0 %v1849
    %v1884 = vpop.f32.mrf.mxu0
    %v1885 = vadd.f32 0.0, %v1884
    %v1886 = vpop.f32.mrf.mxu0
    %v1887 = vpop.f32.mrf.mxu0
    %v1888 = vadd.f32 0.0, %v1887
    %v1889 = vpop.f32.mrf.mxu0
    %1890 = vdwg.mxu0
    %1891 = vmatprep.subr.bf16.mxu0 0
    %1892 = vmatpush1.bf16.msra.mxu0 %v1575
    %1893 = vmatprep.subr.bf16.mxu0 0
    %1894 = vmatpush1.bf16.msra.mxu0 %v1574
    %1895 = vmatprep.subr.bf16.mxu0 0
    %1896 = vmatpush1.bf16.msra.mxu0 %v1573
    %1897 = vmatprep.subr.bf16.mxu0 0
    %1898 = vmatpush1.bf16.msra.mxu0 %v1572
    %1899 = vmatprep.subr.bf16.mxu0 0
    %1900 = vmatpush1.bf16.msra.mxu0 %v1571
    %1901 = vmatprep.subr.bf16.mxu0 0
    %1902 = vmatpush1.bf16.msra.mxu0 %v1570
    %1903 = vmatprep.subr.bf16.mxu0 0
    %1904 = vmatpush1.bf16.msra.mxu0 %v1569
    %1905 = vmatprep.subr.bf16.mxu0 0
    %1906 = vmatpush1.bf16.msra.mxu0 %v1568
    %1907 = vmatprep.subr.bf16.mxu0 0
    %1908 = vmatpush2.bf16.msra.mxu0 0
    %1909 = vmatprep.subr.bf16.mxu0 0
    %1910 = vmatpush2.bf16.msra.mxu0 0
    %1911 = vmatprep.subr.bf16.mxu0 0
    %1912 = vmatpush2.bf16.msra.mxu0 0
    %1913 = vmatprep.subr.bf16.mxu0 0
    %1914 = vmatpush2.bf16.msra.mxu0 0
    %1915 = vmatprep.subr.bf16.mxu0 0
    %1916 = vmatpush2.bf16.msra.mxu0 0
    %1917 = vmatprep.subr.bf16.mxu0 0
    %1918 = vmatpush2.bf16.msra.mxu0 0
    %1919 = vmatprep.subr.bf16.mxu0 0
    %1920 = vmatpush2.bf16.msra.mxu0 0
    %1921 = vmatprep.subr.bf16.mxu0 0
    %1922 = vmatpush2.bf16.msra.mxu0 0
    %1923 = vmatprep.mubr.bf16.mxu0 0
    %1924 = vmatmul.mubr.bf16.gmra.mxu0 %v1145
    %v1925 = vpop.f32.mrf.mxu0
    %v1926 = vadd.f32 %v1885, %v1925
    %v1927 = vpop.f32.mrf.mxu0
    %v1928 = vpop.f32.mrf.mxu0
    %v1929 = vadd.f32 %v1888, %v1928
    %v1930 = vpop.f32.mrf.mxu0
    %1931 = vdwg.mxu0
    %v1932 = vadd.f32 %v1926, %v1534
    %v1933 = vadd.f32 %v1929, %v1534
    %v1934 = vtanh.pop %v1932
    %v1935 = vtanh.pop %v1933
    %v1936 = vpack.c.bf16 %v1935, %v1934
    %1937 = vmatprep.subr.bf16.mxu0 0
    %1938 = vmatpush1.bf16.msra.mxu0 %v1667
    %1939 = vmatprep.subr.bf16.mxu0 0
    %1940 = vmatpush1.bf16.msra.mxu0 %v1666
    %1941 = vmatprep.subr.bf16.mxu0 0
    %1942 = vmatpush1.bf16.msra.mxu0 %v1665
    %1943 = vmatprep.subr.bf16.mxu0 0
    %1944 = vmatpush1.bf16.msra.mxu0 %v1664
    %1945 = vmatprep.subr.bf16.mxu0 0
    %1946 = vmatpush1.bf16.msra.mxu0 %v1663
    %1947 = vmatprep.subr.bf16.mxu0 0
    %1948 = vmatpush1.bf16.msra.mxu0 %v1662
    %1949 = vmatprep.subr.bf16.mxu0 0
    %1950 = vmatpush1.bf16.msra.mxu0 %v1661
    %1951 = vmatprep.subr.bf16.mxu0 0
    %1952 = vmatpush1.bf16.msra.mxu0 %v1660
    %1953 = vmatprep.subr.bf16.mxu0 0
    %1954 = vmatpush2.bf16.msra.mxu0 0
    %1955 = vmatprep.subr.bf16.mxu0 0
    %1956 = vmatpush2.bf16.msra.mxu0 0
    %1957 = vmatprep.subr.bf16.mxu0 0
    %1958 = vmatpush2.bf16.msra.mxu0 0
    %1959 = vmatprep.subr.bf16.mxu0 0
    %1960 = vmatpush2.bf16.msra.mxu0 0
    %1961 = vmatprep.subr.bf16.mxu0 0
    %1962 = vmatpush2.bf16.msra.mxu0 0
    %1963 = vmatprep.subr.bf16.mxu0 0
    %1964 = vmatpush2.bf16.msra.mxu0 0
    %1965 = vmatprep.subr.bf16.mxu0 0
    %1966 = vmatpush2.bf16.msra.mxu0 0
    %1967 = vmatprep.subr.bf16.mxu0 0
    %1968 = vmatpush2.bf16.msra.mxu0 0
    %1969 = vmatprep.mubr.bf16.mxu0 0
    %1970 = vmatmul.mubr.bf16.gmra.mxu0 %v1936
    %v1971 = vpop.f32.mrf.mxu0
    %v1972 = vadd.f32 0.0, %v1971
    %v1973 = vpop.f32.mrf.mxu0
    %v1974 = vpop.f32.mrf.mxu0
    %v1975 = vadd.f32 0.0, %v1974
    %v1976 = vpop.f32.mrf.mxu0
    %1977 = vdwg.mxu0
    %1978 = vmatprep.subr.bf16.mxu0 0
    %1979 = vmatpush1.bf16.msra.mxu0 %v1575
    %1980 = vmatprep.subr.bf16.mxu0 0
    %1981 = vmatpush1.bf16.msra.mxu0 %v1574
    %1982 = vmatprep.subr.bf16.mxu0 0
    %1983 = vmatpush1.bf16.msra.mxu0 %v1573
    %1984 = vmatprep.subr.bf16.mxu0 0
    %1985 = vmatpush1.bf16.msra.mxu0 %v1572
    %1986 = vmatprep.subr.bf16.mxu0 0
    %1987 = vmatpush1.bf16.msra.mxu0 %v1571
    %1988 = vmatprep.subr.bf16.mxu0 0
    %1989 = vmatpush1.bf16.msra.mxu0 %v1570
    %1990 = vmatprep.subr.bf16.mxu0 0
    %1991 = vmatpush1.bf16.msra.mxu0 %v1569
    %1992 = vmatprep.subr.bf16.mxu0 0
    %1993 = vmatpush1.bf16.msra.mxu0 %v1568
    %1994 = vmatprep.subr.bf16.mxu0 0
    %1995 = vmatpush2.bf16.msra.mxu0 0
    %1996 = vmatprep.subr.bf16.mxu0 0
    %1997 = vmatpush2.bf16.msra.mxu0 0
    %1998 = vmatprep.subr.bf16.mxu0 0
    %1999 = vmatpush2.bf16.msra.mxu0 0
    %2000 = vmatprep.subr.bf16.mxu0 0
    %2001 = vmatpush2.bf16.msra.mxu0 0
    %2002 = vmatprep.subr.bf16.mxu0 0
    %2003 = vmatpush2.bf16.msra.mxu0 0
    %2004 = vmatprep.subr.bf16.mxu0 0
    %2005 = vmatpush2.bf16.msra.mxu0 0
    %2006 = vmatprep.subr.bf16.mxu0 0
    %2007 = vmatpush2.bf16.msra.mxu0 0
    %2008 = vmatprep.subr.bf16.mxu0 0
    %2009 = vmatpush2.bf16.msra.mxu0 0
    %2010 = vmatprep.mubr.bf16.mxu0 0
    %2011 = vmatmul.mubr.bf16.gmra.mxu0 %v1232
    %v2012 = vpop.f32.mrf.mxu0
    %v2013 = vadd.f32 %v1972, %v2012
    %v2014 = vpop.f32.mrf.mxu0
    %v2015 = vpop.f32.mrf.mxu0
    %v2016 = vadd.f32 %v1975, %v2015
    %v2017 = vpop.f32.mrf.mxu0
    %2018 = vdwg.mxu0
    %v2019 = vadd.f32 %v2013, %v1534
    %v2020 = vadd.f32 %v2016, %v1534
    %v2021 = vtanh.pop %v2019
    %v2022 = vtanh.pop %v2020
    %v2023 = vpack.c.bf16 %v2022, %v2021
    %2024 = vmatprep.subr.bf16.mxu0 0
    %2025 = vmatpush1.bf16.msra.mxu0 %v1667
    %2026 = vmatprep.subr.bf16.mxu0 0
    %2027 = vmatpush1.bf16.msra.mxu0 %v1666
    %2028 = vmatprep.subr.bf16.mxu0 0
    %2029 = vmatpush1.bf16.msra.mxu0 %v1665
    %2030 = vmatprep.subr.bf16.mxu0 0
    %2031 = vmatpush1.bf16.msra.mxu0 %v1664
    %2032 = vmatprep.subr.bf16.mxu0 0
    %2033 = vmatpush1.bf16.msra.mxu0 %v1663
    %2034 = vmatprep.subr.bf16.mxu0 0
    %2035 = vmatpush1.bf16.msra.mxu0 %v1662
    %2036 = vmatprep.subr.bf16.mxu0 0
    %2037 = vmatpush1.bf16.msra.mxu0 %v1661
    %2038 = vmatprep.subr.bf16.mxu0 0
    %2039 = vmatpush1.bf16.msra.mxu0 %v1660
    %2040 = vmatprep.subr.bf16.mxu0 0
    %2041 = vmatpush2.bf16.msra.mxu0 0
    %2042 = vmatprep.subr.bf16.mxu0 0
    %2043 = vmatpush2.bf16.msra.mxu0 0
    %2044 = vmatprep.subr.bf16.mxu0 0
    %2045 = vmatpush2.bf16.msra.mxu0 0
    %2046 = vmatprep.subr.bf16.mxu0 0
    %2047 = vmatpush2.bf16.msra.mxu0 0
    %2048 = vmatprep.subr.bf16.mxu0 0
    %2049 = vmatpush2.bf16.msra.mxu0 0
    %2050 = vmatprep.subr.bf16.mxu0 0
    %2051 = vmatpush2.bf16.msra.mxu0 0
    %2052 = vmatprep.subr.bf16.mxu0 0
    %2053 = vmatpush2.bf16.msra.mxu0 0
    %2054 = vmatprep.subr.bf16.mxu0 0
    %2055 = vmatpush2.bf16.msra.mxu0 0
    %2056 = vmatprep.mubr.bf16.mxu0 0
    %2057 = vmatmul.mubr.bf16.gmra.mxu0 %v2023
    %v2058 = vpop.f32.mrf.mxu0
    %v2059 = vadd.f32 0.0, %v2058
    %v2060 = vpop.f32.mrf.mxu0
    %v2061 = vpop.f32.mrf.mxu0
    %v2062 = vadd.f32 0.0, %v2061
    %v2063 = vpop.f32.mrf.mxu0
    %2064 = vdwg.mxu0
    %2065 = vmatprep.subr.bf16.mxu0 0
    %2066 = vmatpush1.bf16.msra.mxu0 %v1575
    %2067 = vmatprep.subr.bf16.mxu0 0
    %2068 = vmatpush1.bf16.msra.mxu0 %v1574
    %2069 = vmatprep.subr.bf16.mxu0 0
    %2070 = vmatpush1.bf16.msra.mxu0 %v1573
    %2071 = vmatprep.subr.bf16.mxu0 0
    %2072 = vmatpush1.bf16.msra.mxu0 %v1572
    %2073 = vmatprep.subr.bf16.mxu0 0
    %2074 = vmatpush1.bf16.msra.mxu0 %v1571
    %2075 = vmatprep.subr.bf16.mxu0 0
    %2076 = vmatpush1.bf16.msra.mxu0 %v1570
    %2077 = vmatprep.subr.bf16.mxu0 0
    %2078 = vmatpush1.bf16.msra.mxu0 %v1569
    %2079 = vmatprep.subr.bf16.mxu0 0
    %2080 = vmatpush1.bf16.msra.mxu0 %v1568
    %2081 = vmatprep.subr.bf16.mxu0 0
    %2082 = vmatpush2.bf16.msra.mxu0 0
    %2083 = vmatprep.subr.bf16.mxu0 0
    %2084 = vmatpush2.bf16.msra.mxu0 0
    %2085 = vmatprep.subr.bf16.mxu0 0
    %2086 = vmatpush2.bf16.msra.mxu0 0
    %2087 = vmatprep.subr.bf16.mxu0 0
    %2088 = vmatpush2.bf16.msra.mxu0 0
    %2089 = vmatprep.subr.bf16.mxu0 0
    %2090 = vmatpush2.bf16.msra.mxu0 0
    %2091 = vmatprep.subr.bf16.mxu0 0
    %2092 = vmatpush2.bf16.msra.mxu0 0
    %2093 = vmatprep.subr.bf16.mxu0 0
    %2094 = vmatpush2.bf16.msra.mxu0 0
    %2095 = vmatprep.subr.bf16.mxu0 0
    %2096 = vmatpush2.bf16.msra.mxu0 0
    %2097 = vmatprep.mubr.bf16.mxu0 0
    %2098 = vmatmul.mubr.bf16.gmra.mxu0 %v1319
    %v2099 = vpop.f32.mrf.mxu0
    %v2100 = vadd.f32 %v2059, %v2099
    %v2101 = vpop.f32.mrf.mxu0
    %v2102 = vpop.f32.mrf.mxu0
    %v2103 = vadd.f32 %v2062, %v2102
    %v2104 = vpop.f32.mrf.mxu0
    %2105 = vdwg.mxu0
    %v2106 = vadd.f32 %v2100, %v1534
    %v2107 = vadd.f32 %v2103, %v1534
    %v2108 = vtanh.pop %v2106
    %v2109 = vtanh.pop %v2107
    %v2110 = vpack.c.bf16 %v2109, %v2108
    %2111 = vmatprep.subr.bf16.mxu0 0
    %2112 = vmatpush1.bf16.msra.mxu0 %v1667
    %2113 = vmatprep.subr.bf16.mxu0 0
    %2114 = vmatpush1.bf16.msra.mxu0 %v1666
    %2115 = vmatprep.subr.bf16.mxu0 0
    %2116 = vmatpush1.bf16.msra.mxu0 %v1665
    %2117 = vmatprep.subr.bf16.mxu0 0
    %2118 = vmatpush1.bf16.msra.mxu0 %v1664
    %2119 = vmatprep.subr.bf16.mxu0 0
    %2120 = vmatpush1.bf16.msra.mxu0 %v1663
    %2121 = vmatprep.subr.bf16.mxu0 0
    %2122 = vmatpush1.bf16.msra.mxu0 %v1662
    %2123 = vmatprep.subr.bf16.mxu0 0
    %2124 = vmatpush1.bf16.msra.mxu0 %v1661
    %2125 = vmatprep.subr.bf16.mxu0 0
    %2126 = vmatpush1.bf16.msra.mxu0 %v1660
    %2127 = vmatprep.subr.bf16.mxu0 0
    %2128 = vmatpush2.bf16.msra.mxu0 0
    %2129 = vmatprep.subr.bf16.mxu0 0
    %2130 = vmatpush2.bf16.msra.mxu0 0
    %2131 = vmatprep.subr.bf16.mxu0 0
    %2132 = vmatpush2.bf16.msra.mxu0 0
    %2133 = vmatprep.subr.bf16.mxu0 0
    %2134 = vmatpush2.bf16.msra.mxu0 0
    %2135 = vmatprep.subr.bf16.mxu0 0
    %2136 = vmatpush2.bf16.msra.mxu0 0
    %2137 = vmatprep.subr.bf16.mxu0 0
    %2138 = vmatpush2.bf16.msra.mxu0 0
    %2139 = vmatprep.subr.bf16.mxu0 0
    %2140 = vmatpush2.bf16.msra.mxu0 0
    %2141 = vmatprep.subr.bf16.mxu0 0
    %2142 = vmatpush2.bf16.msra.mxu0 0
    %2143 = vmatprep.mubr.bf16.mxu0 0
    %2144 = vmatmul.mubr.bf16.gmra.mxu0 %v2110
    %v2145 = vpop.f32.mrf.mxu0
    %v2146 = vadd.f32 0.0, %v2145
    %v2147 = vpop.f32.mrf.mxu0
    %v2148 = vpop.f32.mrf.mxu0
    %v2149 = vadd.f32 0.0, %v2148
    %v2150 = vpop.f32.mrf.mxu0
    %2151 = vdwg.mxu0
    %2152 = vmatprep.subr.bf16.mxu0 0
    %2153 = vmatpush1.bf16.msra.mxu0 %v1575
    %2154 = vmatprep.subr.bf16.mxu0 0
    %2155 = vmatpush1.bf16.msra.mxu0 %v1574
    %2156 = vmatprep.subr.bf16.mxu0 0
    %2157 = vmatpush1.bf16.msra.mxu0 %v1573
    %2158 = vmatprep.subr.bf16.mxu0 0
    %2159 = vmatpush1.bf16.msra.mxu0 %v1572
    %2160 = vmatprep.subr.bf16.mxu0 0
    %2161 = vmatpush1.bf16.msra.mxu0 %v1571
    %2162 = vmatprep.subr.bf16.mxu0 0
    %2163 = vmatpush1.bf16.msra.mxu0 %v1570
    %2164 = vmatprep.subr.bf16.mxu0 0
    %2165 = vmatpush1.bf16.msra.mxu0 %v1569
    %2166 = vmatprep.subr.bf16.mxu0 0
    %2167 = vmatpush1.bf16.msra.mxu0 %v1568
    %2168 = vmatprep.subr.bf16.mxu0 0
    %2169 = vmatpush2.bf16.msra.mxu0 0
    %2170 = vmatprep.subr.bf16.mxu0 0
    %2171 = vmatpush2.bf16.msra.mxu0 0
    %2172 = vmatprep.subr.bf16.mxu0 0
    %2173 = vmatpush2.bf16.msra.mxu0 0
    %2174 = vmatprep.subr.bf16.mxu0 0
    %2175 = vmatpush2.bf16.msra.mxu0 0
    %2176 = vmatprep.subr.bf16.mxu0 0
    %2177 = vmatpush2.bf16.msra.mxu0 0
    %2178 = vmatprep.subr.bf16.mxu0 0
    %2179 = vmatpush2.bf16.msra.mxu0 0
    %2180 = vmatprep.subr.bf16.mxu0 0
    %2181 = vmatpush2.bf16.msra.mxu0 0
    %2182 = vmatprep.subr.bf16.mxu0 0
    %2183 = vmatpush2.bf16.msra.mxu0 0
    %2184 = vmatprep.mubr.bf16.mxu0 0
    %2185 = vmatmul.mubr.bf16.gmra.mxu0 %v1407
    %v2186 = vpop.f32.mrf.mxu0
    %v2187 = vadd.f32 %v2146, %v2186
    %v2188 = vpop.f32.mrf.mxu0
    %v2189 = vpop.f32.mrf.mxu0
    %v2190 = vadd.f32 %v2149, %v2189
    %v2191 = vpop.f32.mrf.mxu0
    %2192 = vdwg.mxu0
    %v2193 = vadd.f32 %v2187, %v1534
    %v2194 = vadd.f32 %v2190, %v1534
    %v2195 = vtanh.pop %v2193
    %v2196 = vtanh.pop %v2194
    %v2197 = vpack.c.bf16 %v1493, %v1492
    %v2198 = vpack.c.bf16 %v2196, %v2195
    %2199 = vmatprep.subr.bf16.mxu0 0
    %2200 = vmatpush1.bf16.msra.mxu0 %v1667
    %2201 = vmatprep.subr.bf16.mxu0 0
    %2202 = vmatpush1.bf16.msra.mxu0 %v1666
    %2203 = vmatprep.subr.bf16.mxu0 0
    %2204 = vmatpush1.bf16.msra.mxu0 %v1665
    %2205 = vmatprep.subr.bf16.mxu0 0
    %2206 = vmatpush1.bf16.msra.mxu0 %v1664
    %2207 = vmatprep.subr.bf16.mxu0 0
    %2208 = vmatpush1.bf16.msra.mxu0 %v1663
    %2209 = vmatprep.subr.bf16.mxu0 0
    %2210 = vmatpush1.bf16.msra.mxu0 %v1662
    %2211 = vmatprep.subr.bf16.mxu0 0
    %2212 = vmatpush1.bf16.msra.mxu0 %v1661
    %2213 = vmatprep.subr.bf16.mxu0 0
    %2214 = vmatpush1.bf16.msra.mxu0 %v1660
    %2215 = vmatprep.subr.bf16.mxu0 0
    %2216 = vmatpush2.bf16.msra.mxu0 0
    %2217 = vmatprep.subr.bf16.mxu0 0
    %2218 = vmatpush2.bf16.msra.mxu0 0
    %2219 = vmatprep.subr.bf16.mxu0 0
    %2220 = vmatpush2.bf16.msra.mxu0 0
    %2221 = vmatprep.subr.bf16.mxu0 0
    %2222 = vmatpush2.bf16.msra.mxu0 0
    %2223 = vmatprep.subr.bf16.mxu0 0
    %2224 = vmatpush2.bf16.msra.mxu0 0
    %2225 = vmatprep.subr.bf16.mxu0 0
    %2226 = vmatpush2.bf16.msra.mxu0 0
    %2227 = vmatprep.subr.bf16.mxu0 0
    %2228 = vmatpush2.bf16.msra.mxu0 0
    %2229 = vmatprep.subr.bf16.mxu0 0
    %2230 = vmatpush2.bf16.msra.mxu0 0
    %2231 = vmatprep.mubr.bf16.mxu0 0
    %2232 = vmatmul.mubr.bf16.gmra.mxu0 %v2198
    %v2233 = vpop.f32.mrf.mxu0
    %v2234 = vadd.f32 0.0, %v2233
    %v2235 = vpop.f32.mrf.mxu0
    %v2236 = vpop.f32.mrf.mxu0
    %v2237 = vadd.f32 0.0, %v2236
    %v2238 = vpop.f32.mrf.mxu0
    %2239 = vdwg.mxu0
    %2240 = vmatprep.subr.bf16.mxu0 0
    %2241 = vmatpush1.bf16.msra.mxu0 %v1575
    %2242 = vmatprep.subr.bf16.mxu0 0
    %2243 = vmatpush1.bf16.msra.mxu0 %v1574
    %2244 = vmatprep.subr.bf16.mxu0 0
    %2245 = vmatpush1.bf16.msra.mxu0 %v1573
    %2246 = vmatprep.subr.bf16.mxu0 0
    %2247 = vmatpush1.bf16.msra.mxu0 %v1572
    %2248 = vmatprep.subr.bf16.mxu0 0
    %2249 = vmatpush1.bf16.msra.mxu0 %v1571
    %2250 = vmatprep.subr.bf16.mxu0 0
    %2251 = vmatpush1.bf16.msra.mxu0 %v1570
    %2252 = vmatprep.subr.bf16.mxu0 0
    %2253 = vmatpush1.bf16.msra.mxu0 %v1569
    %2254 = vmatprep.subr.bf16.mxu0 0
    %2255 = vmatpush1.bf16.msra.mxu0 %v1568
    %2256 = vmatprep.subr.bf16.mxu0 0
    %2257 = vmatpush2.bf16.msra.mxu0 0
    %2258 = vmatprep.subr.bf16.mxu0 0
    %2259 = vmatpush2.bf16.msra.mxu0 0
    %2260 = vmatprep.subr.bf16.mxu0 0
    %2261 = vmatpush2.bf16.msra.mxu0 0
    %2262 = vmatprep.subr.bf16.mxu0 0
    %2263 = vmatpush2.bf16.msra.mxu0 0
    %2264 = vmatprep.subr.bf16.mxu0 0
    %2265 = vmatpush2.bf16.msra.mxu0 0
    %2266 = vmatprep.subr.bf16.mxu0 0
    %2267 = vmatpush2.bf16.msra.mxu0 0
    %2268 = vmatprep.subr.bf16.mxu0 0
    %2269 = vmatpush2.bf16.msra.mxu0 0
    %2270 = vmatprep.subr.bf16.mxu0 0
    %2271 = vmatpush2.bf16.msra.mxu0 0
    %2272 = vmatprep.mubr.bf16.mxu0 0
    %2273 = vmatmul.mubr.bf16.gmra.mxu0 %v2197
    %v2274 = vpop.f32.mrf.mxu0
    %v2275 = vadd.f32 %v2234, %v2274
    %v2276 = vpop.f32.mrf.mxu0
    %v2277 = vpop.f32.mrf.mxu0
    %v2278 = vadd.f32 %v2237, %v2277
    %v2279 = vpop.f32.mrf.mxu0
    %2280 = vdwg.mxu0
    %v2281 = vadd.f32 %v2275, %v1534
    %v2282 = vadd.f32 %v2278, %v1534
    %v2283 = vtanh.pop %v2281
    %v2284 = vtanh.pop %v2282
    %v2285 = vpack.c.bf16 %v2284, %v2283
    %v2286 = vld [vmem:[#allocation6] sm:$0xf]
    %v2287 = vld [vmem:[#allocation6 + $0x4] sm:$0xf]
    %v2288 = vld [vmem:[#allocation6 + $0x8] sm:$0xf]
    %v2289 = vld [vmem:[#allocation6 + $0xc] sm:$0xf]
    %v2290 = vld [vmem:[#allocation6 + $0x10] sm:$0xf]
    %v2291 = vld [vmem:[#allocation6 + $0x14] sm:$0xf]
    %v2292 = vld [vmem:[#allocation6 + $0x18] sm:$0xf]
    %v2293 = vld [vmem:[#allocation6 + $0x1c] sm:$0xf]
    %v2294 = vld [vmem:[#allocation6 + $0x20] sm:$0xf]
    %v2295 = vld [vmem:[#allocation6 + $0x24] sm:$0xf]
    %v2296 = vld [vmem:[#allocation6 + $0x28] sm:$0xf]
    %v2297 = vld [vmem:[#allocation6 + $0x2c] sm:$0xf]
    %v2298 = vld [vmem:[#allocation6 + $0x30] sm:$0xf]
    %v2299 = vld [vmem:[#allocation6 + $0x34] sm:$0xf]
    %v2300 = vld [vmem:[#allocation6 + $0x38] sm:$0xf]
    %v2301 = vld [vmem:[#allocation6 + $0x3c] sm:$0xf]
    %v2302 = vld [vmem:[%s6] sm:$0x1]
    %v2304 = vlaneseq
    %v2305 = vshrl.u32 %v2304, 7
    %v2306 = vsub.s32 0, %v2305
    %v2307 = vrot.slane %v2302, %v2306
    %v2325 = vunpack.c.l.b16 %v2286
    %v2326 = vunpack.c.l.b16 %v2287
    %v2327 = vunpack.c.l.b16 %v2288
    %v2328 = vunpack.c.l.b16 %v2289
    %v2329 = vunpack.c.l.b16 %v2290
    %v2330 = vunpack.c.l.b16 %v2291
    %v2331 = vunpack.c.l.b16 %v2292
    %v2332 = vunpack.c.l.b16 %v2293
    %v2333 = vunpack.c.l.b16 %v2294
    %v2334 = vunpack.c.l.b16 %v2295
    %v2335 = vunpack.c.l.b16 %v2296
    %v2336 = vunpack.c.l.b16 %v2297
    %v2337 = vunpack.c.l.b16 %v2298
    %v2338 = vunpack.c.l.b16 %v2299
    %v2339 = vunpack.c.l.b16 %v2300
    %v2340 = vunpack.c.l.b16 %v2301
    %v2341 = vpack.c.b16 %v2326, %v2325
    %v2342 = vpack.c.b16 %v2328, %v2327
    %v2343 = vpack.c.b16 %v2330, %v2329
    %v2344 = vpack.c.b16 %v2332, %v2331
    %v2345 = vpack.c.b16 %v2334, %v2333
    %v2346 = vpack.c.b16 %v2336, %v2335
    %v2347 = vpack.c.b16 %v2338, %v2337
    %v2348 = vpack.c.b16 %v2340, %v2339
    %2357 = vmatprep.subr.bf16.mxu0 0
    %2358 = vmatpush1.bf16.msra.mxu0 %v2348
    %2359 = vmatprep.subr.bf16.mxu0 0
    %2360 = vmatpush1.bf16.msra.mxu0 %v2347
    %2361 = vmatprep.subr.bf16.mxu0 0
    %2362 = vmatpush1.bf16.msra.mxu0 %v2346
    %2363 = vmatprep.subr.bf16.mxu0 0
    %2364 = vmatpush1.bf16.msra.mxu0 %v2345
    %2365 = vmatprep.subr.bf16.mxu0 0
    %2366 = vmatpush1.bf16.msra.mxu0 %v2344
    %2367 = vmatprep.subr.bf16.mxu0 0
    %2368 = vmatpush1.bf16.msra.mxu0 %v2343
    %2369 = vmatprep.subr.bf16.mxu0 0
    %2370 = vmatpush1.bf16.msra.mxu0 %v2342
    %2371 = vmatprep.subr.bf16.mxu0 0
    %2372 = vmatpush1.bf16.msra.mxu0 %v2341
    %2373 = vmatprep.subr.bf16.mxu0 0
    %2374 = vmatpush2.bf16.msra.mxu0 0
    %2375 = vmatprep.subr.bf16.mxu0 0
    %2376 = vmatpush2.bf16.msra.mxu0 0
    %2377 = vmatprep.subr.bf16.mxu0 0
    %2378 = vmatpush2.bf16.msra.mxu0 0
    %2379 = vmatprep.subr.bf16.mxu0 0
    %2380 = vmatpush2.bf16.msra.mxu0 0
    %2381 = vmatprep.subr.bf16.mxu0 0
    %2382 = vmatpush2.bf16.msra.mxu0 0
    %2383 = vmatprep.subr.bf16.mxu0 0
    %2384 = vmatpush2.bf16.msra.mxu0 0
    %2385 = vmatprep.subr.bf16.mxu0 0
    %2386 = vmatpush2.bf16.msra.mxu0 0
    %2387 = vmatprep.subr.bf16.mxu0 0
    %2388 = vmatpush2.bf16.msra.mxu0 0
    %2389 = vmatprep.mubr.bf16.mxu0 0
    %2390 = vmatmul.mubr.bf16.gmra.mxu0 %v2285
    %v2391 = vpop.f32.mrf.mxu0
    %v2392 = vadd.f32 %v2307, %v2391
    %v2393 = vpop.f32.mrf.mxu0
    %v2394 = vpop.f32.mrf.mxu0
    %v2395 = vadd.f32 %v2307, %v2394
    %v2396 = vpop.f32.mrf.mxu0
    %2397 = vdwg.mxu0
    %2398 = vst [vmem:[%s7] sm:$0xff] %v2392
    %2399 = vst [vmem:[%s7 + $0x8] sm:$0xff] %v2395
    // Predicated region
    $region42: #{rnn_forward.1} parent=1 // pred_check
      _
    $region43: #{rnn_forward.1} parent=1 // pred_check_branch
      %2401 = sbr.rel (0) target = $region45
    $region44: #{rnn_forward.1} parent=1 // pred_region
      _
    $region45: #{rnn_forward.1} parent=1 // pred_fallthru
      _
    // Predicated region
    $region46: #{rnn_forward.1} parent=1 // pred_check
      _
    $region47: #{rnn_forward.1} parent=1 // pred_check_branch
      %2403 = sbr.rel (0) target = $region49
    $region48: #{rnn_forward.1} parent=1 // pred_region
      _
    $region49: #{rnn_forward.1} parent=1 // pred_fallthru
      _
    %2404 = vsyncpa [#allocation3], 1
    %2405 = vsyncpa [#allocation5], 1

</llo_original>
